<compile_context>
chip_gen: v7x
topology: tpu7x:2x2x1
jax: 0.10.0
libtpu: 0.0.40
codegen_flags: <defaults>
</compile_context>

<pallas_src>
import math
import functools

import jax
import jax.numpy as jnp
from jax import lax
from jax.experimental import pallas as pl
from jax.experimental.pallas import tpu as pltpu

_CHUNK = 8     # D-loop unroll / output-store chunk (sublane granule)
_LANES = 128   # lane width


def _sigmoid(x):
    # One EUP transcendental (tanh) instead of exp + divide.
    return 0.5 * (jnp.tanh(0.5 * x) + 1.0)


def nade_kernel(xt_ref, v_ref, wt_ref, b_ref, c_ref, out_ref,
                a_ref, logit_ref, *, hidden_dtype):
    H, B = a_ref.shape
    Dp = xt_ref.shape[0]
    n_chunks = Dp // _CHUNK

    # Identity used for the per-chunk (8,H)->(H,8) transpose on the MXU
    # (hoisted: built once, reused every chunk).
    eye = jnp.eye(_CHUNK, dtype=jnp.float32)

    # a <- c, lane-broadcast over the (lane-dense) batch tile.
    a_ref[...] = jnp.broadcast_to(c_ref[...], (H, B)).astype(jnp.float32)

    def chunk_body(ci, carry):
        d0 = pl.multiple_of(ci * _CHUNK, _CHUNK)

        # Chunked sublane-dynamic loads, amortized over _CHUNK dims.
        x_chunk = xt_ref[pl.ds(d0, _CHUNK), :]            # (8, B)
        b_chunk = b_ref[pl.ds(d0, _CHUNK), :]             # (8, 1)
        v_chunk = v_ref[pl.ds(d0, _CHUNK), :]             # (8, H)
        w_chunk = wt_ref[pl.ds(d0, _CHUNK), :]            # (8, H)

        # One transpose per chunk (tiny identity matmul at HIGHEST precision,
        # so the f32 V / W values are not truncated to bf16) puts the rows
        # into (H, 8) columns; the per-d work below is then pure VPU
        # broadcast-FMA + XLU reduce — no MXU on the serial per-d chain.
        dn = (((0,), (0,)), ((), ()))
        v_cols = lax.dot_general(v_chunk, eye, dn,
                                 precision=lax.Precision.HIGHEST,
                                 preferred_element_type=jnp.float32)  # (H, 8)
        w_cols = lax.dot_general(w_chunk, eye, dn,
                                 precision=lax.Precision.HIGHEST,
                                 preferred_element_type=jnp.float32)  # (H, 8)

        # `a` is read from VMEM once per chunk and carried in registers
        # across the static 8-way unroll.
        a = a_ref[...]                                    # (H, B) f32
        for j in range(_CHUNK):                           # static 8-way unroll
            # Hidden activation: bf16 tanh on v6e/v7x (EUP is the bind),
            # f32 elsewhere.  Accumulator / reduction stay f32.
            h = _sigmoid(a.astype(hidden_dtype))          # (H, B)  EUP
            # logits[b] = sum_h V[d, h] * h[h, b]  (VPU mul + XLU sublane sum,
            # promoted back to f32).  Raw logit row -> VMEM scratch; the
            # sigmoid is deferred to a dense (8, B) pass below.
            logit_ref[pl.ds(j, 1), :] = jnp.sum(
                v_cols[:, j:j + 1] * h, axis=0, keepdims=True)
            # a <- a + W[:, d] (outer) x[d, :]  as a VPU broadcast FMA.
            a = a + w_cols[:, j:j + 1] * x_chunk[j:j + 1, :]
        a_ref[...] = a

        # Dense epilogue: one (8,1)+(8,B) bias add, one EUP sigmoid over the
        # full sublane-dense slab, one aligned unmasked (8, B) store.
        p = _sigmoid(logit_ref[...] + b_chunk)            # (8, B) f32
        out_ref[pl.ds(d0, _CHUNK), :] = p.astype(out_ref.dtype)
        return carry

    lax.fori_loop(0, n_chunks, chunk_body, 0)


def _round_up(n, m):
    return ((n + m - 1) // m) * m


def _device_flags():
    """Returns (bf16_eup_ok, tensorcores_per_chip) for the default device."""
    try:
        dev = jax.devices()[0]
    except Exception:
        return False, 1
    if dev.platform != "tpu":
        return False, 1
    kind = dev.device_kind.lower()
    bf16_ok = ("v6" in kind) or ("v7" in kind) or ("7x" in kind)
    two_tc = ("v7" in kind) or ("7x" in kind)
    return bf16_ok, (2 if two_tc else 1)


@functools.partial(jax.jit, static_argnames=("b_tile", "hidden_bf16"))
def _nade_forward(x, V, W, b, c, *, b_tile, hidden_bf16):
    B, D = x.shape
    H = c.shape[0]

    Dp = _round_up(D, _CHUNK)
    Bp = _round_up(_round_up(B, _LANES), b_tile)

    f32 = jnp.float32
    # Zero-pad: padded x / W rows are zero so they never perturb `a`; padded
    # output rows/cols are sliced off below.
    # TODO(synk): a producer/consumer that uses the (D, B) feature-major
    # layout end-to-end would save the x.T pad pass and the final transpose.
    xt = jnp.zeros((Dp, Bp), f32).at[:D, :B].set(x.T.astype(f32))
    V2 = jnp.zeros((Dp, H), f32).at[:D, :].set(V.astype(f32))
    Wt = jnp.zeros((Dp, H), f32).at[:D, :].set(W.T.astype(f32))
    b2 = jnp.zeros((Dp, 1), f32).at[:D, :].set(b.reshape(D, 1).astype(f32))
    c2 = c.reshape(H, 1).astype(f32)

    hidden_dtype = jnp.bfloat16 if hidden_bf16 else jnp.float32
    kernel = functools.partial(nade_kernel, hidden_dtype=hidden_dtype)

    # VMEM footprint estimate (bytes): pipelined blocks (2 buffers each) plus
    # the persistent scratch accumulators.  Only raise the scoped limit when
    # the default (~32 MiB) would not fit.
    est = (2 * Dp * b_tile * 4            # xt blocks
           + 2 * Dp * b_tile * 4          # out blocks
           + 2 * 2 * Dp * H * 4           # V and Wt (resident weights)
           + 2 * (Dp + H) * _LANES * 4    # b and c (lane-padded)
           + H * b_tile * 4               # `a` accumulator scratch
           + _CHUNK * b_tile * 4)         # logits scratch
    vmem_limit = None
    if est > 30 * 1024 * 1024:
        vmem_limit = min(int(est * 5 // 4), 128 * 1024 * 1024)
    # TODO(synk): single-buffer the constant-index V/Wt/b/c blocks
    # (pipeline_mode=pl.Buffered(1)) once that is reliably supported, to halve
    # their footprint on v7x's 64 MiB VMEM for large D*H.

    grid = (Bp // b_tile,)
    out_t = pl.pallas_call(
        kernel,
        out_shape=jax.ShapeDtypeStruct((Dp, Bp), f32),
        grid_spec=pltpu.PrefetchScalarGridSpec(
            num_scalar_prefetch=0,
            grid=grid,
            in_specs=[
                pl.BlockSpec((Dp, b_tile), lambda i: (0, i)),   # xt: batch-tiled
                pl.BlockSpec((Dp, H), lambda i: (0, 0)),        # V : resident
                pl.BlockSpec((Dp, H), lambda i: (0, 0)),        # Wt: resident
                pl.BlockSpec((Dp, 1), lambda i: (0, 0)),        # b
                pl.BlockSpec((H, 1), lambda i: (0, 0)),         # c
            ],
            out_specs=pl.BlockSpec((Dp, b_tile), lambda i: (0, i)),
            scratch_shapes=[
                pltpu.VMEM((H, b_tile), jnp.float32),           # a accumulator
                pltpu.VMEM((_CHUNK, b_tile), jnp.float32),      # logit rows
            ],
        ),
        compiler_params=pltpu.CompilerParams(
            dimension_semantics=("parallel",),
            vmem_limit_bytes=vmem_limit),
    )(xt, V2, Wt, b2, c2)

    return out_t[:D, :B].T


def nade_forward(x, V, W, b, c, *, b_tile=None, hidden_bf16=None):
    """x: (B, D) float32; returns x_hat: (B, D) float32 (NADE forward)."""
    B = x.shape[0]
    bf16_ok, n_cores = _device_flags()
    if hidden_bf16 is None:
        hidden_bf16 = bf16_ok            # bf16 tanh only on v6e / v7x
    Bp = _round_up(B, _LANES)
    if b_tile is None:
        if n_cores >= 2:
            # v7x: make the "parallel" batch grid have >= 2 steps when
            # possible so both TensorCores are used.
            b_tile = min(512, max(_LANES, _round_up(Bp // 2, _LANES)))
        else:
            b_tile = min(512, Bp)        # single-TC: bigger tile, less overhead
    if b_tile <= 0 or b_tile % _LANES != 0:
        raise ValueError(
            f"b_tile must be a positive multiple of {_LANES}, got {b_tile}")
    return _nade_forward(x, V, W, b, c, b_tile=int(b_tile),
                         hidden_bf16=bool(hidden_bf16))


def nade_ref(x, V, W, b, c):
    """Pure-JAX reference mirroring the PyTorch loop."""
    B, D = x.shape
    a = jnp.broadcast_to(c[None, :], (B, c.shape[0]))     # == a.T in PyTorch code
    cols = []
    for d in range(D):
        h = jax.nn.sigmoid(a)                              # (B, H)
        p = jax.nn.sigmoid(b[d] + h @ V[d, :])             # (B,)
        cols.append(p[:, None])
        a = a + x[:, d:d + 1] * W[:, d][None, :]
    return jnp.concatenate(cols, axis=1)                   # (B, D)


if __name__ == "__main__":
    B, D, H = 8, 16, 32   # small binary-image NADE: D = 4x4 "pixels"

    key = jax.random.PRNGKey(0)
    kV, kb, kW, kc, kx = jax.random.split(key, 5)

    # Deterministic kaiming-uniform-style init matching the __init__ shapes.
    bound_V = math.sqrt(6.0 / H)            # fan_in of V:(D,H) is H
    V = jax.random.uniform(kV, (D, H), jnp.float32, -bound_V, bound_V)
    b = jax.random.uniform(kb, (D,), jnp.float32,
                           -1.0 / math.sqrt(H), 1.0 / math.sqrt(H))
    bound_W = math.sqrt(6.0 / D)            # fan_in of W:(H,D) is D
    W = jax.random.uniform(kW, (H, D), jnp.float32, -bound_W, bound_W)
    c = jax.random.uniform(kc, (H,), jnp.float32,
                           -1.0 / math.sqrt(D), 1.0 / math.sqrt(D))

    # Binary input batch, like binarized MNIST.
    x = (jax.random.uniform(kx, (B, D)) < 0.5).astype(jnp.float32)

    # Auto path (may use bf16 hidden activations on v6e/v7x) + strict f32 path.
    x_hat = jax.block_until_ready(nade_forward(x, V, W, b, c))
    x_hat_f32 = jax.block_until_ready(
        nade_forward(x, V, W, b, c, hidden_bf16=False))
    x_hat_ref = jax.block_until_ready(nade_ref(x, V, W, b, c))

    assert x_hat.shape == (B, D)
    err_f32 = float(jnp.max(jnp.abs(x_hat_f32 - x_hat_ref)))
    assert jnp.allclose(x_hat_f32, x_hat_ref, atol=3e-5, rtol=3e-4), err_f32
    err_auto = float(jnp.max(jnp.abs(x_hat - x_hat_ref)))
    assert jnp.allclose(x_hat, x_hat_ref, atol=2e-2, rtol=2e-2), err_auto

    print("KERNEL_OK")
</pallas_src>

<mosaic_0001>
module attributes {stable_mosaic.version = 11 : i64} {
  func.func @nade_kernel(%arg0: i32, %arg1: memref<16x128xf32, #tpu.memory_space<vmem>>, %arg2: memref<16x32xf32, #tpu.memory_space<vmem>>, %arg3: memref<16x32xf32, #tpu.memory_space<vmem>>, %arg4: memref<16x1xf32, #tpu.memory_space<vmem>>, %arg5: memref<32x1xf32, #tpu.memory_space<vmem>>, %arg6: memref<16x128xf32, #tpu.memory_space<vmem>>, %arg7: memref<32x128xf32, #tpu.memory_space<vmem>>, %arg8: memref<8x128xf32, #tpu.memory_space<vmem>>) attributes {dimension_semantics = [#tpu.dimension_semantics<parallel>], iteration_bounds = array<i64: 1>, scalar_prefetch = 0 : i64, scratch_operands = 2 : i64, tpu.core_type = #tpu.core_type<tc>, window_params = [{transform_indices = @transform_0, window_bounds = array<i64: 16, 128>}, {pipeline_mode = #tpu.pipeline_mode<synchronous>, transform_indices = @transform_1, window_bounds = array<i64: 16, 32>}, {pipeline_mode = #tpu.pipeline_mode<synchronous>, transform_indices = @transform_2, window_bounds = array<i64: 16, 32>}, {pipeline_mode = #tpu.pipeline_mode<synchronous>, transform_indices = @transform_3, window_bounds = array<i64: 16, 1>}, {pipeline_mode = #tpu.pipeline_mode<synchronous>, transform_indices = @transform_4, window_bounds = array<i64: 32, 1>}, {transform_indices = @transform_5, window_bounds = array<i64: 16, 128>}]} {
    %0 = tpu.iota {dimensions = array<i32: 0>} : vector<8x8xi32>
    %1 = tpu.iota {dimensions = array<i32: 1>} : vector<8x8xi32>
    %c0_i32 = arith.constant 0 : i32
    %2 = vector.broadcast %c0_i32 : i32 to vector<8x8xi32>
    %3 = arith.addi %0, %2 : vector<8x8xi32>
    %4 = arith.cmpi eq, %3, %1 : vector<8x8xi32>
    %5 = arith.extui %4 : vector<8x8xi1> to vector<8x8xi32>
    %6 = arith.sitofp %5 : vector<8x8xi32> to vector<8x8xf32>
    %c0 = arith.constant 0 : index
    %c0_0 = arith.constant 0 : index
    %7 = vector.load %arg5[%c0, %c0_0] : memref<32x1xf32, #tpu.memory_space<vmem>>, vector<32x1xf32>
    %8 = vector.shape_cast %7 : vector<32x1xf32> to vector<32x1xf32>
    %9 = vector.broadcast %8 : vector<32x1xf32> to vector<32x128xf32>
    %c0_1 = arith.constant 0 : index
    %c0_2 = arith.constant 0 : index
    %10 = vector.load %arg7[%c0_1, %c0_2] : memref<32x128xf32, #tpu.memory_space<vmem>>, vector<32x128xf32>
    tpu.vector_store %arg7[%c0_1, %c0_2], %9 {strides = array<i32>} : memref<32x128xf32, #tpu.memory_space<vmem>>, vector<32x128xf32>,
    %c0_i32_3 = arith.constant 0 : i32
    %c2_i32 = arith.constant 2 : i32
    %11 = arith.addi %c0_i32_3, %c2_i32 : i32
    %c1_i32 = arith.constant 1 : i32
    scf.for %arg9 = %c0_i32_3 to %11 step %c1_i32  : i32 {
      %c8_i32 = arith.constant 8 : i32
      %12 = arith.muli %arg9, %c8_i32 : i32
      %13 = tpu.assume_multiple %12, 8 : i32
      %14 = arith.index_cast %13 : i32 to index
      %c0_5 = arith.constant 0 : index
      %15 = vector.load %arg1[%14, %c0_5] : memref<16x128xf32, #tpu.memory_space<vmem>>, vector<8x128xf32>
      %16 = arith.index_cast %13 : i32 to index
      %c0_6 = arith.constant 0 : index
      %17 = vector.load %arg4[%16, %c0_6] : memref<16x1xf32, #tpu.memory_space<vmem>>, vector<8x1xf32>
      %18 = arith.index_cast %13 : i32 to index
      %c0_7 = arith.constant 0 : index
      %19 = vector.load %arg2[%18, %c0_7] : memref<16x32xf32, #tpu.memory_space<vmem>>, vector<8x32xf32>
      %20 = arith.index_cast %13 : i32 to index
      %c0_8 = arith.constant 0 : index
      %21 = vector.load %arg3[%20, %c0_8] : memref<16x32xf32, #tpu.memory_space<vmem>>, vector<8x32xf32>
      %cst = arith.constant dense<0.000000e+00> : vector<32x8xf32>
      %22 = tpu.matmul %19, %6, %cst {dimension_numbers = #tpu.dot_dimension_numbers<[0], [0], [1], [1], [0, 1, 1, 1], [], []>, precision = #tpu.contract_precision<fp32>} : vector<8x32xf32>, vector<8x8xf32>, vector<32x8xf32> -> vector<32x8xf32>
      %cst_9 = arith.constant dense<0.000000e+00> : vector<32x8xf32>
      %23 = tpu.matmul %21, %6, %cst_9 {dimension_numbers = #tpu.dot_dimension_numbers<[0], [0], [1], [1], [0, 1, 1, 1], [], []>, precision = #tpu.contract_precision<fp32>} : vector<8x32xf32>, vector<8x8xf32>, vector<32x8xf32> -> vector<32x8xf32>
      %c0_10 = arith.constant 0 : index
      %c0_11 = arith.constant 0 : index
      %24 = vector.load %arg7[%c0_10, %c0_11] : memref<32x128xf32, #tpu.memory_space<vmem>>, vector<32x128xf32>
      %cst_12 = arith.constant 5.000000e-01 : f32
      %25 = vector.broadcast %cst_12 : f32 to vector<32x128xf32>
      %26 = arith.mulf %25, %24 : vector<32x128xf32>
      %27 = math.tanh %26 : vector<32x128xf32>
      %cst_13 = arith.constant 1.000000e+00 : f32
      %28 = vector.broadcast %cst_13 : f32 to vector<32x128xf32>
      %29 = arith.addf %27, %28 : vector<32x128xf32>
      %cst_14 = arith.constant 5.000000e-01 : f32
      %30 = vector.broadcast %cst_14 : f32 to vector<32x128xf32>
      %31 = arith.mulf %30, %29 : vector<32x128xf32>
      %32 = vector.extract_strided_slice %22 {offsets = [0, 0], sizes = [32, 1], strides = [1, 1]} : vector<32x8xf32> to vector<32x1xf32>
      %33 = vector.broadcast %32 : vector<32x1xf32> to vector<32x128xf32>
      %34 = arith.mulf %33, %31 : vector<32x128xf32>
      %cst_15 = arith.constant dense<0.000000e+00> : vector<128xf32>
      %35 = vector.multi_reduction <add>, %34, %cst_15 [0] : vector<32x128xf32> to vector<128xf32>
      %36 = vector.shape_cast %35 : vector<128xf32> to vector<1x128xf32>
      %c0_16 = arith.constant 0 : index
      %c0_17 = arith.constant 0 : index
      %37 = vector.load %arg8[%c0_16, %c0_17] : memref<8x128xf32, #tpu.memory_space<vmem>>, vector<1x128xf32>
      tpu.vector_store %arg8[%c0_16, %c0_17], %36 {strides = array<i32>} : memref<8x128xf32, #tpu.memory_space<vmem>>, vector<1x128xf32>,
      %38 = vector.extract_strided_slice %23 {offsets = [0, 0], sizes = [32, 1], strides = [1, 1]} : vector<32x8xf32> to vector<32x1xf32>
      %39 = vector.extract_strided_slice %15 {offsets = [0, 0], sizes = [1, 128], strides = [1, 1]} : vector<8x128xf32> to vector<1x128xf32>
      %40 = vector.broadcast %38 : vector<32x1xf32> to vector<32x128xf32>
      %41 = vector.broadcast %39 : vector<1x128xf32> to vector<32x128xf32>
      %42 = arith.mulf %40, %41 : vector<32x128xf32>
      %43 = arith.addf %24, %42 : vector<32x128xf32>
      %cst_18 = arith.constant 5.000000e-01 : f32
      %44 = vector.broadcast %cst_18 : f32 to vector<32x128xf32>
      %45 = arith.mulf %44, %43 : vector<32x128xf32>
      %46 = math.tanh %45 : vector<32x128xf32>
      %cst_19 = arith.constant 1.000000e+00 : f32
      %47 = vector.broadcast %cst_19 : f32 to vector<32x128xf32>
      %48 = arith.addf %46, %47 : vector<32x128xf32>
      %cst_20 = arith.constant 5.000000e-01 : f32
      %49 = vector.broadcast %cst_20 : f32 to vector<32x128xf32>
      %50 = arith.mulf %49, %48 : vector<32x128xf32>
      %51 = vector.extract_strided_slice %22 {offsets = [0, 1], sizes = [32, 1], strides = [1, 1]} : vector<32x8xf32> to vector<32x1xf32>
      %52 = vector.broadcast %51 : vector<32x1xf32> to vector<32x128xf32>
      %53 = arith.mulf %52, %50 : vector<32x128xf32>
      %cst_21 = arith.constant dense<0.000000e+00> : vector<128xf32>
      %54 = vector.multi_reduction <add>, %53, %cst_21 [0] : vector<32x128xf32> to vector<128xf32>
      %55 = vector.shape_cast %54 : vector<128xf32> to vector<1x128xf32>
      %c1 = arith.constant 1 : index
      %c0_22 = arith.constant 0 : index
      %56 = vector.load %arg8[%c1, %c0_22] : memref<8x128xf32, #tpu.memory_space<vmem>>, vector<1x128xf32>
      tpu.vector_store %arg8[%c1, %c0_22], %55 {strides = array<i32>} : memref<8x128xf32, #tpu.memory_space<vmem>>, vector<1x128xf32>,
      %57 = vector.extract_strided_slice %23 {offsets = [0, 1], sizes = [32, 1], strides = [1, 1]} : vector<32x8xf32> to vector<32x1xf32>
      %58 = vector.extract_strided_slice %15 {offsets = [1, 0], sizes = [1, 128], strides = [1, 1]} : vector<8x128xf32> to vector<1x128xf32>
      %59 = vector.broadcast %57 : vector<32x1xf32> to vector<32x128xf32>
      %60 = vector.broadcast %58 : vector<1x128xf32> to vector<32x128xf32>
      %61 = arith.mulf %59, %60 : vector<32x128xf32>
      %62 = arith.addf %43, %61 : vector<32x128xf32>
      %cst_23 = arith.constant 5.000000e-01 : f32
      %63 = vector.broadcast %cst_23 : f32 to vector<32x128xf32>
      %64 = arith.mulf %63, %62 : vector<32x128xf32>
      %65 = math.tanh %64 : vector<32x128xf32>
      %cst_24 = arith.constant 1.000000e+00 : f32
      %66 = vector.broadcast %cst_24 : f32 to vector<32x128xf32>
      %67 = arith.addf %65, %66 : vector<32x128xf32>
      %cst_25 = arith.constant 5.000000e-01 : f32
      %68 = vector.broadcast %cst_25 : f32 to vector<32x128xf32>
      %69 = arith.mulf %68, %67 : vector<32x128xf32>
      %70 = vector.extract_strided_slice %22 {offsets = [0, 2], sizes = [32, 1], strides = [1, 1]} : vector<32x8xf32> to vector<32x1xf32>
      %71 = vector.broadcast %70 : vector<32x1xf32> to vector<32x128xf32>
      %72 = arith.mulf %71, %69 : vector<32x128xf32>
      %cst_26 = arith.constant dense<0.000000e+00> : vector<128xf32>
      %73 = vector.multi_reduction <add>, %72, %cst_26 [0] : vector<32x128xf32> to vector<128xf32>
      %74 = vector.shape_cast %73 : vector<128xf32> to vector<1x128xf32>
      %c2 = arith.constant 2 : index
      %c0_27 = arith.constant 0 : index
      %75 = vector.load %arg8[%c2, %c0_27] : memref<8x128xf32, #tpu.memory_space<vmem>>, vector<1x128xf32>
      tpu.vector_store %arg8[%c2, %c0_27], %74 {strides = array<i32>} : memref<8x128xf32, #tpu.memory_space<vmem>>, vector<1x128xf32>,
      %76 = vector.extract_strided_slice %23 {offsets = [0, 2], sizes = [32, 1], strides = [1, 1]} : vector<32x8xf32> to vector<32x1xf32>
      %77 = vector.extract_strided_slice %15 {offsets = [2, 0], sizes = [1, 128], strides = [1, 1]} : vector<8x128xf32> to vector<1x128xf32>
      %78 = vector.broadcast %76 : vector<32x1xf32> to vector<32x128xf32>
      %79 = vector.broadcast %77 : vector<1x128xf32> to vector<32x128xf32>
      %80 = arith.mulf %78, %79 : vector<32x128xf32>
      %81 = arith.addf %62, %80 : vector<32x128xf32>
      %cst_28 = arith.constant 5.000000e-01 : f32
      %82 = vector.broadcast %cst_28 : f32 to vector<32x128xf32>
      %83 = arith.mulf %82, %81 : vector<32x128xf32>
      %84 = math.tanh %83 : vector<32x128xf32>
      %cst_29 = arith.constant 1.000000e+00 : f32
      %85 = vector.broadcast %cst_29 : f32 to vector<32x128xf32>
      %86 = arith.addf %84, %85 : vector<32x128xf32>
      %cst_30 = arith.constant 5.000000e-01 : f32
      %87 = vector.broadcast %cst_30 : f32 to vector<32x128xf32>
      %88 = arith.mulf %87, %86 : vector<32x128xf32>
      %89 = vector.extract_strided_slice %22 {offsets = [0, 3], sizes = [32, 1], strides = [1, 1]} : vector<32x8xf32> to vector<32x1xf32>
      %90 = vector.broadcast %89 : vector<32x1xf32> to vector<32x128xf32>
      %91 = arith.mulf %90, %88 : vector<32x128xf32>
      %cst_31 = arith.constant dense<0.000000e+00> : vector<128xf32>
      %92 = vector.multi_reduction <add>, %91, %cst_31 [0] : vector<32x128xf32> to vector<128xf32>
      %93 = vector.shape_cast %92 : vector<128xf32> to vector<1x128xf32>
      %c3 = arith.constant 3 : index
      %c0_32 = arith.constant 0 : index
      %94 = vector.load %arg8[%c3, %c0_32] : memref<8x128xf32, #tpu.memory_space<vmem>>, vector<1x128xf32>
      tpu.vector_store %arg8[%c3, %c0_32], %93 {strides = array<i32>} : memref<8x128xf32, #tpu.memory_space<vmem>>, vector<1x128xf32>,
      %95 = vector.extract_strided_slice %23 {offsets = [0, 3], sizes = [32, 1], strides = [1, 1]} : vector<32x8xf32> to vector<32x1xf32>
      %96 = vector.extract_strided_slice %15 {offsets = [3, 0], sizes = [1, 128], strides = [1, 1]} : vector<8x128xf32> to vector<1x128xf32>
      %97 = vector.broadcast %95 : vector<32x1xf32> to vector<32x128xf32>
      %98 = vector.broadcast %96 : vector<1x128xf32> to vector<32x128xf32>
      %99 = arith.mulf %97, %98 : vector<32x128xf32>
      %100 = arith.addf %81, %99 : vector<32x128xf32>
      %cst_33 = arith.constant 5.000000e-01 : f32
      %101 = vector.broadcast %cst_33 : f32 to vector<32x128xf32>
      %102 = arith.mulf %101, %100 : vector<32x128xf32>
      %103 = math.tanh %102 : vector<32x128xf32>
      %cst_34 = arith.constant 1.000000e+00 : f32
      %104 = vector.broadcast %cst_34 : f32 to vector<32x128xf32>
      %105 = arith.addf %103, %104 : vector<32x128xf32>
      %cst_35 = arith.constant 5.000000e-01 : f32
      %106 = vector.broadcast %cst_35 : f32 to vector<32x128xf32>
      %107 = arith.mulf %106, %105 : vector<32x128xf32>
      %108 = vector.extract_strided_slice %22 {offsets = [0, 4], sizes = [32, 1], strides = [1, 1]} : vector<32x8xf32> to vector<32x1xf32>
      %109 = vector.broadcast %108 : vector<32x1xf32> to vector<32x128xf32>
      %110 = arith.mulf %109, %107 : vector<32x128xf32>
      %cst_36 = arith.constant dense<0.000000e+00> : vector<128xf32>
      %111 = vector.multi_reduction <add>, %110, %cst_36 [0] : vector<32x128xf32> to vector<128xf32>
      %112 = vector.shape_cast %111 : vector<128xf32> to vector<1x128xf32>
      %c4 = arith.constant 4 : index
      %c0_37 = arith.constant 0 : index
      %113 = vector.load %arg8[%c4, %c0_37] : memref<8x128xf32, #tpu.memory_space<vmem>>, vector<1x128xf32>
      tpu.vector_store %arg8[%c4, %c0_37], %112 {strides = array<i32>} : memref<8x128xf32, #tpu.memory_space<vmem>>, vector<1x128xf32>,
      %114 = vector.extract_strided_slice %23 {offsets = [0, 4], sizes = [32, 1], strides = [1, 1]} : vector<32x8xf32> to vector<32x1xf32>
      %115 = vector.extract_strided_slice %15 {offsets = [4, 0], sizes = [1, 128], strides = [1, 1]} : vector<8x128xf32> to vector<1x128xf32>
      %116 = vector.broadcast %114 : vector<32x1xf32> to vector<32x128xf32>
      %117 = vector.broadcast %115 : vector<1x128xf32> to vector<32x128xf32>
      %118 = arith.mulf %116, %117 : vector<32x128xf32>
      %119 = arith.addf %100, %118 : vector<32x128xf32>
      %cst_38 = arith.constant 5.000000e-01 : f32
      %120 = vector.broadcast %cst_38 : f32 to vector<32x128xf32>
      %121 = arith.mulf %120, %119 : vector<32x128xf32>
      %122 = math.tanh %121 : vector<32x128xf32>
      %cst_39 = arith.constant 1.000000e+00 : f32
      %123 = vector.broadcast %cst_39 : f32 to vector<32x128xf32>
      %124 = arith.addf %122, %123 : vector<32x128xf32>
      %cst_40 = arith.constant 5.000000e-01 : f32
      %125 = vector.broadcast %cst_40 : f32 to vector<32x128xf32>
      %126 = arith.mulf %125, %124 : vector<32x128xf32>
      %127 = vector.extract_strided_slice %22 {offsets = [0, 5], sizes = [32, 1], strides = [1, 1]} : vector<32x8xf32> to vector<32x1xf32>
      %128 = vector.broadcast %127 : vector<32x1xf32> to vector<32x128xf32>
      %129 = arith.mulf %128, %126 : vector<32x128xf32>
      %cst_41 = arith.constant dense<0.000000e+00> : vector<128xf32>
      %130 = vector.multi_reduction <add>, %129, %cst_41 [0] : vector<32x128xf32> to vector<128xf32>
      %131 = vector.shape_cast %130 : vector<128xf32> to vector<1x128xf32>
      %c5 = arith.constant 5 : index
      %c0_42 = arith.constant 0 : index
      %132 = vector.load %arg8[%c5, %c0_42] : memref<8x128xf32, #tpu.memory_space<vmem>>, vector<1x128xf32>
      tpu.vector_store %arg8[%c5, %c0_42], %131 {strides = array<i32>} : memref<8x128xf32, #tpu.memory_space<vmem>>, vector<1x128xf32>,
      %133 = vector.extract_strided_slice %23 {offsets = [0, 5], sizes = [32, 1], strides = [1, 1]} : vector<32x8xf32> to vector<32x1xf32>
      %134 = vector.extract_strided_slice %15 {offsets = [5, 0], sizes = [1, 128], strides = [1, 1]} : vector<8x128xf32> to vector<1x128xf32>
      %135 = vector.broadcast %133 : vector<32x1xf32> to vector<32x128xf32>
      %136 = vector.broadcast %134 : vector<1x128xf32> to vector<32x128xf32>
      %137 = arith.mulf %135, %136 : vector<32x128xf32>
      %138 = arith.addf %119, %137 : vector<32x128xf32>
      %cst_43 = arith.constant 5.000000e-01 : f32
      %139 = vector.broadcast %cst_43 : f32 to vector<32x128xf32>
      %140 = arith.mulf %139, %138 : vector<32x128xf32>
      %141 = math.tanh %140 : vector<32x128xf32>
      %cst_44 = arith.constant 1.000000e+00 : f32
      %142 = vector.broadcast %cst_44 : f32 to vector<32x128xf32>
      %143 = arith.addf %141, %142 : vector<32x128xf32>
      %cst_45 = arith.constant 5.000000e-01 : f32
      %144 = vector.broadcast %cst_45 : f32 to vector<32x128xf32>
      %145 = arith.mulf %144, %143 : vector<32x128xf32>
      %146 = vector.extract_strided_slice %22 {offsets = [0, 6], sizes = [32, 1], strides = [1, 1]} : vector<32x8xf32> to vector<32x1xf32>
      %147 = vector.broadcast %146 : vector<32x1xf32> to vector<32x128xf32>
      %148 = arith.mulf %147, %145 : vector<32x128xf32>
      %cst_46 = arith.constant dense<0.000000e+00> : vector<128xf32>
      %149 = vector.multi_reduction <add>, %148, %cst_46 [0] : vector<32x128xf32> to vector<128xf32>
      %150 = vector.shape_cast %149 : vector<128xf32> to vector<1x128xf32>
      %c6 = arith.constant 6 : index
      %c0_47 = arith.constant 0 : index
      %151 = vector.load %arg8[%c6, %c0_47] : memref<8x128xf32, #tpu.memory_space<vmem>>, vector<1x128xf32>
      tpu.vector_store %arg8[%c6, %c0_47], %150 {strides = array<i32>} : memref<8x128xf32, #tpu.memory_space<vmem>>, vector<1x128xf32>,
      %152 = vector.extract_strided_slice %23 {offsets = [0, 6], sizes = [32, 1], strides = [1, 1]} : vector<32x8xf32> to vector<32x1xf32>
      %153 = vector.extract_strided_slice %15 {offsets = [6, 0], sizes = [1, 128], strides = [1, 1]} : vector<8x128xf32> to vector<1x128xf32>
      %154 = vector.broadcast %152 : vector<32x1xf32> to vector<32x128xf32>
      %155 = vector.broadcast %153 : vector<1x128xf32> to vector<32x128xf32>
      %156 = arith.mulf %154, %155 : vector<32x128xf32>
      %157 = arith.addf %138, %156 : vector<32x128xf32>
      %cst_48 = arith.constant 5.000000e-01 : f32
      %158 = vector.broadcast %cst_48 : f32 to vector<32x128xf32>
      %159 = arith.mulf %158, %157 : vector<32x128xf32>
      %160 = math.tanh %159 : vector<32x128xf32>
      %cst_49 = arith.constant 1.000000e+00 : f32
      %161 = vector.broadcast %cst_49 : f32 to vector<32x128xf32>
      %162 = arith.addf %160, %161 : vector<32x128xf32>
      %cst_50 = arith.constant 5.000000e-01 : f32
      %163 = vector.broadcast %cst_50 : f32 to vector<32x128xf32>
      %164 = arith.mulf %163, %162 : vector<32x128xf32>
      %165 = vector.extract_strided_slice %22 {offsets = [0, 7], sizes = [32, 1], strides = [1, 1]} : vector<32x8xf32> to vector<32x1xf32>
      %166 = vector.broadcast %165 : vector<32x1xf32> to vector<32x128xf32>
      %167 = arith.mulf %166, %164 : vector<32x128xf32>
      %cst_51 = arith.constant dense<0.000000e+00> : vector<128xf32>
      %168 = vector.multi_reduction <add>, %167, %cst_51 [0] : vector<32x128xf32> to vector<128xf32>
      %169 = vector.shape_cast %168 : vector<128xf32> to vector<1x128xf32>
      %c7 = arith.constant 7 : index
      %c0_52 = arith.constant 0 : index
      %170 = vector.load %arg8[%c7, %c0_52] : memref<8x128xf32, #tpu.memory_space<vmem>>, vector<1x128xf32>
      tpu.vector_store %arg8[%c7, %c0_52], %169 {strides = array<i32>} : memref<8x128xf32, #tpu.memory_space<vmem>>, vector<1x128xf32>,
      %171 = vector.extract_strided_slice %23 {offsets = [0, 7], sizes = [32, 1], strides = [1, 1]} : vector<32x8xf32> to vector<32x1xf32>
      %172 = vector.extract_strided_slice %15 {offsets = [7, 0], sizes = [1, 128], strides = [1, 1]} : vector<8x128xf32> to vector<1x128xf32>
      %173 = vector.broadcast %171 : vector<32x1xf32> to vector<32x128xf32>
      %174 = vector.broadcast %172 : vector<1x128xf32> to vector<32x128xf32>
      %175 = arith.mulf %173, %174 : vector<32x128xf32>
      %176 = arith.addf %157, %175 : vector<32x128xf32>
      %c0_53 = arith.constant 0 : index
      %c0_54 = arith.constant 0 : index
      %177 = vector.load %arg7[%c0_53, %c0_54] : memref<32x128xf32, #tpu.memory_space<vmem>>, vector<32x128xf32>
      tpu.vector_store %arg7[%c0_53, %c0_54], %176 {strides = array<i32>} : memref<32x128xf32, #tpu.memory_space<vmem>>, vector<32x128xf32>,
      %c0_55 = arith.constant 0 : index
      %c0_56 = arith.constant 0 : index
      %178 = vector.load %arg8[%c0_55, %c0_56] : memref<8x128xf32, #tpu.memory_space<vmem>>, vector<8x128xf32>
      %179 = vector.broadcast %17 : vector<8x1xf32> to vector<8x128xf32>
      %180 = arith.addf %178, %179 : vector<8x128xf32>
      %cst_57 = arith.constant 5.000000e-01 : f32
      %181 = vector.broadcast %cst_57 : f32 to vector<8x128xf32>
      %182 = arith.mulf %181, %180 : vector<8x128xf32>
      %183 = math.tanh %182 : vector<8x128xf32>
      %cst_58 = arith.constant 1.000000e+00 : f32
      %184 = vector.broadcast %cst_58 : f32 to vector<8x128xf32>
      %185 = arith.addf %183, %184 : vector<8x128xf32>
      %cst_59 = arith.constant 5.000000e-01 : f32
      %186 = vector.broadcast %cst_59 : f32 to vector<8x128xf32>
      %187 = arith.mulf %186, %185 : vector<8x128xf32>
      %188 = arith.index_cast %13 : i32 to index
      %c0_60 = arith.constant 0 : index
      %189 = vector.load %arg6[%188, %c0_60] : memref<16x128xf32, #tpu.memory_space<vmem>>, vector<8x128xf32>
      tpu.vector_store %arg6[%188, %c0_60], %187 {strides = array<i32>} : memref<16x128xf32, #tpu.memory_space<vmem>>, vector<8x128xf32>,
    }
    %c2_i32_4 = arith.constant 2 : i32
    return
  }
  func.func @transform_0(%arg0: i32) -> (i32, i32) {
    %c0_i32 = arith.constant 0 : i32
    %c0_i32_0 = arith.constant 0 : i32
    return %c0_i32, %arg0 : i32, i32
  }
  func.func @transform_1(%arg0: i32) -> (i32, i32) {
    %c0_i32 = arith.constant 0 : i32
    %c0_i32_0 = arith.constant 0 : i32
    %c0_i32_1 = arith.constant 0 : i32
    return %c0_i32, %c0_i32_0 : i32, i32
  }
  func.func @transform_2(%arg0: i32) -> (i32, i32) {
    %c0_i32 = arith.constant 0 : i32
    %c0_i32_0 = arith.constant 0 : i32
    %c0_i32_1 = arith.constant 0 : i32
    return %c0_i32, %c0_i32_0 : i32, i32
  }
  func.func @transform_3(%arg0: i32) -> (i32, i32) {
    %c0_i32 = arith.constant 0 : i32
    %c0_i32_0 = arith.constant 0 : i32
    %c0_i32_1 = arith.constant 0 : i32
    return %c0_i32, %c0_i32_0 : i32, i32
  }
  func.func @transform_4(%arg0: i32) -> (i32, i32) {
    %c0_i32 = arith.constant 0 : i32
    %c0_i32_0 = arith.constant 0 : i32
    %c0_i32_1 = arith.constant 0 : i32
    return %c0_i32, %c0_i32_0 : i32, i32
  }
  func.func @transform_5(%arg0: i32) -> (i32, i32) {
    %c0_i32 = arith.constant 0 : i32
    %c0_i32_0 = arith.constant 0 : i32
    return %c0_i32, %arg0 : i32, i32
  }
}

</mosaic_0001>

<llo_original>
// kernel: _nade_forward.1
$region0: #{_nade_forward.1}
  #allocation0 [shape = 'u32[]', space=smem, size = 0x4, offset = 0x4, fixed_abs, tag = 'smem constant byte address 0x4 - core index']
  #allocation1 [shape = 'u32[144,128]{1,0:T(1,128)}', space=vmem, size = 0x12000, scoped, tag = 'internal scratch']
  #allocation2 [shape = 'f32[32,128]{1,0:T(8,128)}', space=vmem, size = 0x4000, scoped, tag = 'scratch operand']
  #allocation3 [shape = 'f32[8,128]{1,0:T(8,128)}', space=vmem, size = 0x1000, scoped, tag = 'scratch operand']
  %s0 = inlined_call_operand.vmem [shape: f32[16,128], index: 0, kind: input, shape index: {}]
  %s1 = inlined_call_operand.vmem [shape: f32[16,32], index: 1, kind: input, shape index: {}]
  %s2 = inlined_call_operand.vmem [shape: f32[16,32], index: 2, kind: input, shape index: {}]
  %s3 = inlined_call_operand.vmem [shape: f32[16,1], index: 3, kind: input, shape index: {}]
  %s4 = inlined_call_operand.vmem [shape: f32[32,1], index: 4, kind: input, shape index: {}]
  %s5 = inlined_call_operand.vmem [shape: f32[16,128], index: 5, kind: output, shape index: {}]
  %s6 = sld [smem:[#allocation0]]
  $region37: #{_nade_forward.1} parent=0
    _
  %s8 = ssub.s32 1, %s6
  %s9 = scalar_select 0, %s8, %s6
  // Predicated region
  $region2: #{_nade_forward.1} parent=0 // pred_check
    _
  $region3: #{_nade_forward.1} parent=0 // pred_check_branch
    %11 = sbr.rel (0) target = $region5
  $region4: #{_nade_forward.1} parent=0 // pred_region
    _
  $region5: #{_nade_forward.1} parent=0 // pred_fallthru
    _
  // Predicated region
  $region6: #{_nade_forward.1} parent=0 // pred_check
    _
  $region7: #{_nade_forward.1} parent=0 // pred_check_branch
    %13 = sbr.rel (0) target = $region9
  $region8: #{_nade_forward.1} parent=0 // pred_region
    _
  $region9: #{_nade_forward.1} parent=0 // pred_fallthru
    _
  // Predicated region
  $region10: #{_nade_forward.1} parent=0 // pred_check
    _
  $region11: #{_nade_forward.1} parent=0 // pred_check_branch
    %15 = sbr.rel (0) target = $region13
  $region12: #{_nade_forward.1} parent=0 // pred_region
    _
  $region13: #{_nade_forward.1} parent=0 // pred_fallthru
    _
  // Predicated region
  $region14: #{_nade_forward.1} parent=0 // pred_check
    _
  $region15: #{_nade_forward.1} parent=0 // pred_check_branch
    %17 = sbr.rel (0) target = $region17
  $region16: #{_nade_forward.1} parent=0 // pred_region
    _
  $region17: #{_nade_forward.1} parent=0 // pred_fallthru
    _
  // Predicated region
  $region18: #{_nade_forward.1} parent=0 // pred_check
    _
  $region19: #{_nade_forward.1} parent=0 // pred_check_branch
    %19 = sbr.rel (0) target = $region21
  $region20: #{_nade_forward.1} parent=0 // pred_region
    _
  $region21: #{_nade_forward.1} parent=0 // pred_fallthru
    _
  %v20 = vlaneseq
  %v21 = vshrl.u32 %v20, 7
  %v22 = vlaneseq
  %v23 = vand.u32 %v22, 127
  %vm24 = vcmp.eq.s32.totalorder %v21, %v23
  %v25 = vsel %vm24, 1, 0
  %v26 = vcvt.s32.f32 %v25
  %v27 = vld [vmem:[%s4] sm:$0xff]
  %v28 = vld [vmem:[%s4 + $0x8] sm:$0xff]
  %v29 = vld [vmem:[%s4 + $0x10] sm:$0xff]
  %v30 = vld [vmem:[%s4 + $0x18] sm:$0xff]
  %32 = vset.pattern.permute.xlu0 0
  %33 = vperm.xlu0 %32, %v27
  %v34 = vpop.permute.xlu0 %33
  %37 = vset.pattern.permute.xlu0 0
  %38 = vperm.xlu0 %37, %v28
  %v39 = vpop.permute.xlu0 %38
  %42 = vset.pattern.permute.xlu0 0
  %43 = vperm.xlu0 %42, %v29
  %v44 = vpop.permute.xlu0 %43
  %47 = vset.pattern.permute.xlu0 0
  %48 = vperm.xlu0 %47, %v30
  %v49 = vpop.permute.xlu0 %48
  %51 = vst [vmem:[#allocation2] sm:$0xff] %v34
  %52 = vst [vmem:[#allocation2 + $0x8] sm:$0xff] %v39
  %53 = vst [vmem:[#allocation2 + $0x10] sm:$0xff] %v44
  %54 = vst [vmem:[#allocation2 + $0x18] sm:$0xff] %v49
  loop: start=0, step=1, limit=2
  $region22: #{_nade_forward.1} parent=0 // loop_pre_header
    _
  $region23: #{_nade_forward.1} parent=0 // loop_header
    %s56 = sphi 0, %s60
    %p57 = scmp.ge.s32.totalorder %s56, 2
  $region24: #{_nade_forward.1} parent=0 // loop_header_branch
    %59 = sbr.rel (%p57) target = $region28
  $region25: #{_nade_forward.1} parent=0 // loop_body
    %s61 = smul.u32 %s56, 8
    %s62 = scalar_lea.vmem %s0, %s61
    %v63 = vld [vmem:[%s62] sm:$0xff]
    %s64 = scalar_lea.vmem %s3, %s61
    %v65 = vld [vmem:[%s64] sm:$0xff]
    %s66 = scalar_lea.vmem %s1, %s61
    %v67 = vld [vmem:[%s66] sm:$0xff]
    %s68 = scalar_lea.vmem %s2, %s61
    %v69 = vld [vmem:[%s68] sm:$0xff]
    %70 = vxpose.xlu0.b32.start [1/16] %v67, 128
    %71 = vxpose.xlu0.b32.cont [2/16] 0.0, 128
    %72 = vxpose.xlu0.b32.cont [3/16] 0.0, 128
    %73 = vxpose.xlu0.b32.cont [4/16] 0.0, 128
    %74 = vxpose.xlu0.b32.cont [5/16] 0.0, 128
    %75 = vxpose.xlu0.b32.cont [6/16] 0.0, 128
    %76 = vxpose.xlu0.b32.cont [7/16] 0.0, 128
    %77 = vxpose.xlu0.b32.cont [8/16] 0.0, 128
    %78 = vxpose.xlu0.b32.cont [9/16] 0.0, 128
    %79 = vxpose.xlu0.b32.cont [10/16] 0.0, 128
    %80 = vxpose.xlu0.b32.cont [11/16] 0.0, 128
    %81 = vxpose.xlu0.b32.cont [12/16] 0.0, 128
    %82 = vxpose.xlu0.b32.cont [13/16] 0.0, 128
    %83 = vxpose.xlu0.b32.cont [14/16] 0.0, 128
    %84 = vxpose.xlu0.b32.cont [15/16] 0.0, 128
    %85 = vxpose.xlu0.b32.end [16/16] 0.0, 128
    %v86 = vpop.trf.xlu0
    %v87 = vpop.trf.xlu0
    %v88 = vpop.trf.xlu0
    %v89 = vpop.trf.xlu0
    %v90 = vpop.trf.xlu0
    %v91 = vpop.trf.xlu0
    %v92 = vpop.trf.xlu0
    %v93 = vpop.trf.xlu0
    %v94 = vpop.trf.xlu0
    %v95 = vpop.trf.xlu0
    %v96 = vpop.trf.xlu0
    %v97 = vpop.trf.xlu0
    %v98 = vpop.trf.xlu0
    %v99 = vpop.trf.xlu0
    %v100 = vpop.trf.xlu0
    %v101 = vpop.trf.xlu0
    %vm102 = vcmask 64512
    %v104 = vsel %vm102, %v86, 0
    %v107 = vsel %vm102, %v87, 0
    %v110 = vsel %vm102, %v88, 0
    %v113 = vsel %vm102, %v89, 0
    %115 = vmatprep.subr.mxu0 0.0
    %v116 = vand.u32 %v26, 4294901760
    %117 = vmatpush1.msra.mxu0 %v116
    %118 = vmatprep.subr.mxu0 0.0
    %119 = vmatpush1.msra.mxu0 0.0
    %120 = vmatprep.subr.mxu0 0.0
    %121 = vmatpush1.msra.mxu0 0.0
    %122 = vmatprep.subr.mxu0 0.0
    %123 = vmatpush1.msra.mxu0 0.0
    %124 = vmatprep.subr.mxu0 0.0
    %125 = vmatpush1.msra.mxu0 0.0
    %126 = vmatprep.subr.mxu0 0.0
    %127 = vmatpush1.msra.mxu0 0.0
    %128 = vmatprep.subr.mxu0 0.0
    %129 = vmatpush1.msra.mxu0 0.0
    %130 = vmatprep.subr.mxu0 0.0
    %131 = vmatpush1.msra.mxu0 0.0
    %132 = vmatprep.subr.mxu0 0.0
    %133 = vmatpush1.msra.mxu0 0.0
    %134 = vmatprep.subr.mxu0 0.0
    %135 = vmatpush1.msra.mxu0 0.0
    %136 = vmatprep.subr.mxu0 0.0
    %137 = vmatpush1.msra.mxu0 0.0
    %138 = vmatprep.subr.mxu0 0.0
    %139 = vmatpush1.msra.mxu0 0.0
    %140 = vmatprep.subr.mxu0 0.0
    %141 = vmatpush1.msra.mxu0 0.0
    %142 = vmatprep.subr.mxu0 0.0
    %143 = vmatpush1.msra.mxu0 0.0
    %144 = vmatprep.subr.mxu0 0.0
    %145 = vmatpush1.msra.mxu0 0.0
    %146 = vmatprep.subr.mxu0 0.0
    %147 = vmatpush1.msra.mxu0 0.0
    %148 = vmatprep.subr.mxu0 0.0
    %149 = vmatpush1.msra.mxu0 0.0
    %150 = vmatprep.subr.mxu0 0.0
    %151 = vmatpush1.msra.mxu0 0.0
    %152 = vmatprep.subr.mxu0 0.0
    %153 = vmatpush1.msra.mxu0 0.0
    %154 = vmatprep.subr.mxu0 0.0
    %155 = vmatpush1.msra.mxu0 0.0
    %156 = vmatprep.subr.mxu0 0.0
    %157 = vmatpush1.msra.mxu0 0.0
    %158 = vmatprep.subr.mxu0 0.0
    %159 = vmatpush1.msra.mxu0 0.0
    %160 = vmatprep.subr.mxu0 0.0
    %161 = vmatpush1.msra.mxu0 0.0
    %162 = vmatprep.subr.mxu0 0.0
    %163 = vmatpush1.msra.mxu0 0.0
    %164 = vmatprep.subr.mxu0 0.0
    %165 = vmatpush1.msra.mxu0 0.0
    %166 = vmatprep.subr.mxu0 0.0
    %167 = vmatpush1.msra.mxu0 0.0
    %168 = vmatprep.subr.mxu0 0.0
    %169 = vmatpush1.msra.mxu0 0.0
    %170 = vmatprep.subr.mxu0 0.0
    %171 = vmatpush1.msra.mxu0 0.0
    %172 = vmatprep.subr.mxu0 0.0
    %173 = vmatpush1.msra.mxu0 0.0
    %174 = vmatprep.subr.mxu0 0.0
    %175 = vmatpush1.msra.mxu0 0.0
    %176 = vmatprep.subr.mxu0 0.0
    %177 = vmatpush1.msra.mxu0 0.0
    %178 = vmatprep.subr.mxu0 0.0
    %179 = vmatpush1.msra.mxu0 0.0
    %180 = vmatprep.mubr.f32.mxu0 0.0
    %v181 = vand.u32 %v104, 4294901760
    %v182 = vsub.f32 %v104, %v181
    %v183 = vand.u32 %v182, 4294901760
    %v184 = vsub.f32 %v182, %v183
    %v185 = vand.u32 %v184, 4294901760
    %186 = vmatmul.mubr.f32.gmra.mrb[0].mxu0 %v185
    %v187 = vpop.f32.mrb[0].mxu0
    %v188 = vadd.f32 0.0, %v187
    %v189 = vpop.f32.mrb[0].mxu0
    %190 = vmatprep.mubr.f32.mxu0 0.0
    %v191 = vand.u32 %v107, 4294901760
    %v192 = vsub.f32 %v107, %v191
    %v193 = vand.u32 %v192, 4294901760
    %v194 = vsub.f32 %v192, %v193
    %v195 = vand.u32 %v194, 4294901760
    %196 = vmatmul.mubr.f32.gmra.mrb[0].mxu0 %v195
    %v197 = vpop.f32.mrb[0].mxu0
    %v198 = vadd.f32 0.0, %v197
    %v199 = vpop.f32.mrb[0].mxu0
    %200 = vmatprep.mubr.f32.mxu0 0.0
    %v201 = vand.u32 %v110, 4294901760
    %v202 = vsub.f32 %v110, %v201
    %v203 = vand.u32 %v202, 4294901760
    %v204 = vsub.f32 %v202, %v203
    %v205 = vand.u32 %v204, 4294901760
    %206 = vmatmul.mubr.f32.gmra.mrb[0].mxu0 %v205
    %v207 = vpop.f32.mrb[0].mxu0
    %v208 = vadd.f32 0.0, %v207
    %v209 = vpop.f32.mrb[0].mxu0
    %210 = vmatprep.mubr.f32.mxu0 0.0
    %v211 = vand.u32 %v113, 4294901760
    %v212 = vsub.f32 %v113, %v211
    %v213 = vand.u32 %v212, 4294901760
    %v214 = vsub.f32 %v212, %v213
    %v215 = vand.u32 %v214, 4294901760
    %216 = vmatmul.mubr.f32.gmra.mrb[0].mxu0 %v215
    %v217 = vpop.f32.mrb[0].mxu0
    %v218 = vadd.f32 0.0, %v217
    %v219 = vpop.f32.mrb[0].mxu0
    %220 = vdwg.mxu0
    %221 = vmatprep.subr.mxu0 0.0
    %v222 = vand.u32 %v26, 4294901760
    %v223 = vsub.f32 %v26, %v222
    %v224 = vand.u32 %v223, 4294901760
    %v225 = vsub.f32 %v223, %v224
    %v226 = vand.u32 %v225, 4294901760
    %227 = vmatpush1.msra.mxu0 %v226
    %228 = vmatprep.subr.mxu0 0.0
    %229 = vmatpush1.msra.mxu0 0.0
    %230 = vmatprep.subr.mxu0 0.0
    %231 = vmatpush1.msra.mxu0 0.0
    %232 = vmatprep.subr.mxu0 0.0
    %233 = vmatpush1.msra.mxu0 0.0
    %234 = vmatprep.subr.mxu0 0.0
    %235 = vmatpush1.msra.mxu0 0.0
    %236 = vmatprep.subr.mxu0 0.0
    %237 = vmatpush1.msra.mxu0 0.0
    %238 = vmatprep.subr.mxu0 0.0
    %239 = vmatpush1.msra.mxu0 0.0
    %240 = vmatprep.subr.mxu0 0.0
    %241 = vmatpush1.msra.mxu0 0.0
    %242 = vmatprep.subr.mxu0 0.0
    %243 = vmatpush1.msra.mxu0 0.0
    %244 = vmatprep.subr.mxu0 0.0
    %245 = vmatpush1.msra.mxu0 0.0
    %246 = vmatprep.subr.mxu0 0.0
    %247 = vmatpush1.msra.mxu0 0.0
    %248 = vmatprep.subr.mxu0 0.0
    %249 = vmatpush1.msra.mxu0 0.0
    %250 = vmatprep.subr.mxu0 0.0
    %251 = vmatpush1.msra.mxu0 0.0
    %252 = vmatprep.subr.mxu0 0.0
    %253 = vmatpush1.msra.mxu0 0.0
    %254 = vmatprep.subr.mxu0 0.0
    %255 = vmatpush1.msra.mxu0 0.0
    %256 = vmatprep.subr.mxu0 0.0
    %257 = vmatpush1.msra.mxu0 0.0
    %258 = vmatprep.subr.mxu0 0.0
    %259 = vmatpush1.msra.mxu0 0.0
    %260 = vmatprep.subr.mxu0 0.0
    %261 = vmatpush1.msra.mxu0 0.0
    %262 = vmatprep.subr.mxu0 0.0
    %263 = vmatpush1.msra.mxu0 0.0
    %264 = vmatprep.subr.mxu0 0.0
    %265 = vmatpush1.msra.mxu0 0.0
    %266 = vmatprep.subr.mxu0 0.0
    %267 = vmatpush1.msra.mxu0 0.0
    %268 = vmatprep.subr.mxu0 0.0
    %269 = vmatpush1.msra.mxu0 0.0
    %270 = vmatprep.subr.mxu0 0.0
    %271 = vmatpush1.msra.mxu0 0.0
    %272 = vmatprep.subr.mxu0 0.0
    %273 = vmatpush1.msra.mxu0 0.0
    %274 = vmatprep.subr.mxu0 0.0
    %275 = vmatpush1.msra.mxu0 0.0
    %276 = vmatprep.subr.mxu0 0.0
    %277 = vmatpush1.msra.mxu0 0.0
    %278 = vmatprep.subr.mxu0 0.0
    %279 = vmatpush1.msra.mxu0 0.0
    %280 = vmatprep.subr.mxu0 0.0
    %281 = vmatpush1.msra.mxu0 0.0
    %282 = vmatprep.subr.mxu0 0.0
    %283 = vmatpush1.msra.mxu0 0.0
    %284 = vmatprep.subr.mxu0 0.0
    %285 = vmatpush1.msra.mxu0 0.0
    %286 = vmatprep.subr.mxu0 0.0
    %287 = vmatpush1.msra.mxu0 0.0
    %288 = vmatprep.subr.mxu0 0.0
    %289 = vmatpush1.msra.mxu0 0.0
    %290 = vmatprep.mubr.f32.mxu0 0.0
    %v291 = vand.u32 %v104, 4294901760
    %292 = vmatmul.mubr.f32.gmra.mrb[0].mxu0 %v291
    %v293 = vpop.f32.mrb[0].mxu0
    %v294 = vadd.f32 %v188, %v293
    %v295 = vpop.f32.mrb[0].mxu0
    %296 = vmatprep.mubr.f32.mxu0 0.0
    %v297 = vand.u32 %v107, 4294901760
    %298 = vmatmul.mubr.f32.gmra.mrb[0].mxu0 %v297
    %v299 = vpop.f32.mrb[0].mxu0
    %v300 = vadd.f32 %v198, %v299
    %v301 = vpop.f32.mrb[0].mxu0
    %302 = vmatprep.mubr.f32.mxu0 0.0
    %v303 = vand.u32 %v110, 4294901760
    %304 = vmatmul.mubr.f32.gmra.mrb[0].mxu0 %v303
    %v305 = vpop.f32.mrb[0].mxu0
    %v306 = vadd.f32 %v208, %v305
    %v307 = vpop.f32.mrb[0].mxu0
    %308 = vmatprep.mubr.f32.mxu0 0.0
    %v309 = vand.u32 %v113, 4294901760
    %310 = vmatmul.mubr.f32.gmra.mrb[0].mxu0 %v309
    %v311 = vpop.f32.mrb[0].mxu0
    %v312 = vadd.f32 %v218, %v311
    %v313 = vpop.f32.mrb[0].mxu0
    %314 = vdwg.mxu0
    %315 = vmatprep.subr.mxu0 0.0
    %v316 = vand.u32 %v26, 4294901760
    %v317 = vsub.f32 %v26, %v316
    %318 = vmatpush1.msra.mxu0 %v317
    %319 = vmatprep.subr.mxu0 0.0
    %320 = vmatpush1.msra.mxu0 0.0
    %321 = vmatprep.subr.mxu0 0.0
    %322 = vmatpush1.msra.mxu0 0.0
    %323 = vmatprep.subr.mxu0 0.0
    %324 = vmatpush1.msra.mxu0 0.0
    %325 = vmatprep.subr.mxu0 0.0
    %326 = vmatpush1.msra.mxu0 0.0
    %327 = vmatprep.subr.mxu0 0.0
    %328 = vmatpush1.msra.mxu0 0.0
    %329 = vmatprep.subr.mxu0 0.0
    %330 = vmatpush1.msra.mxu0 0.0
    %331 = vmatprep.subr.mxu0 0.0
    %332 = vmatpush1.msra.mxu0 0.0
    %333 = vmatprep.subr.mxu0 0.0
    %334 = vmatpush1.msra.mxu0 0.0
    %335 = vmatprep.subr.mxu0 0.0
    %336 = vmatpush1.msra.mxu0 0.0
    %337 = vmatprep.subr.mxu0 0.0
    %338 = vmatpush1.msra.mxu0 0.0
    %339 = vmatprep.subr.mxu0 0.0
    %340 = vmatpush1.msra.mxu0 0.0
    %341 = vmatprep.subr.mxu0 0.0
    %342 = vmatpush1.msra.mxu0 0.0
    %343 = vmatprep.subr.mxu0 0.0
    %344 = vmatpush1.msra.mxu0 0.0
    %345 = vmatprep.subr.mxu0 0.0
    %346 = vmatpush1.msra.mxu0 0.0
    %347 = vmatprep.subr.mxu0 0.0
    %348 = vmatpush1.msra.mxu0 0.0
    %349 = vmatprep.subr.mxu0 0.0
    %350 = vmatpush1.msra.mxu0 0.0
    %351 = vmatprep.subr.mxu0 0.0
    %352 = vmatpush1.msra.mxu0 0.0
    %353 = vmatprep.subr.mxu0 0.0
    %354 = vmatpush1.msra.mxu0 0.0
    %355 = vmatprep.subr.mxu0 0.0
    %356 = vmatpush1.msra.mxu0 0.0
    %357 = vmatprep.subr.mxu0 0.0
    %358 = vmatpush1.msra.mxu0 0.0
    %359 = vmatprep.subr.mxu0 0.0
    %360 = vmatpush1.msra.mxu0 0.0
    %361 = vmatprep.subr.mxu0 0.0
    %362 = vmatpush1.msra.mxu0 0.0
    %363 = vmatprep.subr.mxu0 0.0
    %364 = vmatpush1.msra.mxu0 0.0
    %365 = vmatprep.subr.mxu0 0.0
    %366 = vmatpush1.msra.mxu0 0.0
    %367 = vmatprep.subr.mxu0 0.0
    %368 = vmatpush1.msra.mxu0 0.0
    %369 = vmatprep.subr.mxu0 0.0
    %370 = vmatpush1.msra.mxu0 0.0
    %371 = vmatprep.subr.mxu0 0.0
    %372 = vmatpush1.msra.mxu0 0.0
    %373 = vmatprep.subr.mxu0 0.0
    %374 = vmatpush1.msra.mxu0 0.0
    %375 = vmatprep.subr.mxu0 0.0
    %376 = vmatpush1.msra.mxu0 0.0
    %377 = vmatprep.subr.mxu0 0.0
    %378 = vmatpush1.msra.mxu0 0.0
    %379 = vmatprep.subr.mxu0 0.0
    %380 = vmatpush1.msra.mxu0 0.0
    %381 = vmatprep.mubr.f32.mxu0 0.0
    %v382 = vand.u32 %v104, 4294901760
    %v383 = vsub.f32 %v104, %v382
    %384 = vmatmul.mubr.f32.gmra.mrb[0].mxu0 %v383
    %v385 = vpop.f32.mrb[0].mxu0
    %v386 = vadd.f32 %v294, %v385
    %v387 = vpop.f32.mrb[0].mxu0
    %388 = vmatprep.mubr.f32.mxu0 0.0
    %v389 = vand.u32 %v107, 4294901760
    %v390 = vsub.f32 %v107, %v389
    %391 = vmatmul.mubr.f32.gmra.mrb[0].mxu0 %v390
    %v392 = vpop.f32.mrb[0].mxu0
    %v393 = vadd.f32 %v300, %v392
    %v394 = vpop.f32.mrb[0].mxu0
    %395 = vmatprep.mubr.f32.mxu0 0.0
    %v396 = vand.u32 %v110, 4294901760
    %v397 = vsub.f32 %v110, %v396
    %398 = vmatmul.mubr.f32.gmra.mrb[0].mxu0 %v397
    %v399 = vpop.f32.mrb[0].mxu0
    %v400 = vadd.f32 %v306, %v399
    %v401 = vpop.f32.mrb[0].mxu0
    %402 = vmatprep.mubr.f32.mxu0 0.0
    %v403 = vand.u32 %v113, 4294901760
    %v404 = vsub.f32 %v113, %v403
    %405 = vmatmul.mubr.f32.gmra.mrb[0].mxu0 %v404
    %v406 = vpop.f32.mrb[0].mxu0
    %v407 = vadd.f32 %v312, %v406
    %v408 = vpop.f32.mrb[0].mxu0
    %409 = vdwg.mxu0
    %410 = vmatprep.subr.mxu0 0.0
    %v411 = vand.u32 %v26, 4294901760
    %412 = vmatpush1.msra.mxu0 %v411
    %413 = vmatprep.subr.mxu0 0.0
    %414 = vmatpush1.msra.mxu0 0.0
    %415 = vmatprep.subr.mxu0 0.0
    %416 = vmatpush1.msra.mxu0 0.0
    %417 = vmatprep.subr.mxu0 0.0
    %418 = vmatpush1.msra.mxu0 0.0
    %419 = vmatprep.subr.mxu0 0.0
    %420 = vmatpush1.msra.mxu0 0.0
    %421 = vmatprep.subr.mxu0 0.0
    %422 = vmatpush1.msra.mxu0 0.0
    %423 = vmatprep.subr.mxu0 0.0
    %424 = vmatpush1.msra.mxu0 0.0
    %425 = vmatprep.subr.mxu0 0.0
    %426 = vmatpush1.msra.mxu0 0.0
    %427 = vmatprep.subr.mxu0 0.0
    %428 = vmatpush1.msra.mxu0 0.0
    %429 = vmatprep.subr.mxu0 0.0
    %430 = vmatpush1.msra.mxu0 0.0
    %431 = vmatprep.subr.mxu0 0.0
    %432 = vmatpush1.msra.mxu0 0.0
    %433 = vmatprep.subr.mxu0 0.0
    %434 = vmatpush1.msra.mxu0 0.0
    %435 = vmatprep.subr.mxu0 0.0
    %436 = vmatpush1.msra.mxu0 0.0
    %437 = vmatprep.subr.mxu0 0.0
    %438 = vmatpush1.msra.mxu0 0.0
    %439 = vmatprep.subr.mxu0 0.0
    %440 = vmatpush1.msra.mxu0 0.0
    %441 = vmatprep.subr.mxu0 0.0
    %442 = vmatpush1.msra.mxu0 0.0
    %443 = vmatprep.subr.mxu0 0.0
    %444 = vmatpush1.msra.mxu0 0.0
    %445 = vmatprep.subr.mxu0 0.0
    %446 = vmatpush1.msra.mxu0 0.0
    %447 = vmatprep.subr.mxu0 0.0
    %448 = vmatpush1.msra.mxu0 0.0
    %449 = vmatprep.subr.mxu0 0.0
    %450 = vmatpush1.msra.mxu0 0.0
    %451 = vmatprep.subr.mxu0 0.0
    %452 = vmatpush1.msra.mxu0 0.0
    %453 = vmatprep.subr.mxu0 0.0
    %454 = vmatpush1.msra.mxu0 0.0
    %455 = vmatprep.subr.mxu0 0.0
    %456 = vmatpush1.msra.mxu0 0.0
    %457 = vmatprep.subr.mxu0 0.0
    %458 = vmatpush1.msra.mxu0 0.0
    %459 = vmatprep.subr.mxu0 0.0
    %460 = vmatpush1.msra.mxu0 0.0
    %461 = vmatprep.subr.mxu0 0.0
    %462 = vmatpush1.msra.mxu0 0.0
    %463 = vmatprep.subr.mxu0 0.0
    %464 = vmatpush1.msra.mxu0 0.0
    %465 = vmatprep.subr.mxu0 0.0
    %466 = vmatpush1.msra.mxu0 0.0
    %467 = vmatprep.subr.mxu0 0.0
    %468 = vmatpush1.msra.mxu0 0.0
    %469 = vmatprep.subr.mxu0 0.0
    %470 = vmatpush1.msra.mxu0 0.0
    %471 = vmatprep.subr.mxu0 0.0
    %472 = vmatpush1.msra.mxu0 0.0
    %473 = vmatprep.subr.mxu0 0.0
    %474 = vmatpush1.msra.mxu0 0.0
    %475 = vmatprep.mubr.f32.mxu0 0.0
    %v476 = vand.u32 %v104, 4294901760
    %v477 = vsub.f32 %v104, %v476
    %v478 = vand.u32 %v477, 4294901760
    %479 = vmatmul.mubr.f32.gmra.mrb[0].mxu0 %v478
    %v480 = vpop.f32.mrb[0].mxu0
    %v481 = vadd.f32 %v386, %v480
    %v482 = vpop.f32.mrb[0].mxu0
    %483 = vmatprep.mubr.f32.mxu0 0.0
    %v484 = vand.u32 %v107, 4294901760
    %v485 = vsub.f32 %v107, %v484
    %v486 = vand.u32 %v485, 4294901760
    %487 = vmatmul.mubr.f32.gmra.mrb[0].mxu0 %v486
    %v488 = vpop.f32.mrb[0].mxu0
    %v489 = vadd.f32 %v393, %v488
    %v490 = vpop.f32.mrb[0].mxu0
    %491 = vmatprep.mubr.f32.mxu0 0.0
    %v492 = vand.u32 %v110, 4294901760
    %v493 = vsub.f32 %v110, %v492
    %v494 = vand.u32 %v493, 4294901760
    %495 = vmatmul.mubr.f32.gmra.mrb[0].mxu0 %v494
    %v496 = vpop.f32.mrb[0].mxu0
    %v497 = vadd.f32 %v400, %v496
    %v498 = vpop.f32.mrb[0].mxu0
    %499 = vmatprep.mubr.f32.mxu0 0.0
    %v500 = vand.u32 %v113, 4294901760
    %v501 = vsub.f32 %v113, %v500
    %v502 = vand.u32 %v501, 4294901760
    %503 = vmatmul.mubr.f32.gmra.mrb[0].mxu0 %v502
    %v504 = vpop.f32.mrb[0].mxu0
    %v505 = vadd.f32 %v407, %v504
    %v506 = vpop.f32.mrb[0].mxu0
    %507 = vdwg.mxu0
    %508 = vmatprep.subr.mxu0 0.0
    %v509 = vand.u32 %v26, 4294901760
    %v510 = vsub.f32 %v26, %v509
    %v511 = vand.u32 %v510, 4294901760
    %512 = vmatpush1.msra.mxu0 %v511
    %513 = vmatprep.subr.mxu0 0.0
    %514 = vmatpush1.msra.mxu0 0.0
    %515 = vmatprep.subr.mxu0 0.0
    %516 = vmatpush1.msra.mxu0 0.0
    %517 = vmatprep.subr.mxu0 0.0
    %518 = vmatpush1.msra.mxu0 0.0
    %519 = vmatprep.subr.mxu0 0.0
    %520 = vmatpush1.msra.mxu0 0.0
    %521 = vmatprep.subr.mxu0 0.0
    %522 = vmatpush1.msra.mxu0 0.0
    %523 = vmatprep.subr.mxu0 0.0
    %524 = vmatpush1.msra.mxu0 0.0
    %525 = vmatprep.subr.mxu0 0.0
    %526 = vmatpush1.msra.mxu0 0.0
    %527 = vmatprep.subr.mxu0 0.0
    %528 = vmatpush1.msra.mxu0 0.0
    %529 = vmatprep.subr.mxu0 0.0
    %530 = vmatpush1.msra.mxu0 0.0
    %531 = vmatprep.subr.mxu0 0.0
    %532 = vmatpush1.msra.mxu0 0.0
    %533 = vmatprep.subr.mxu0 0.0
    %534 = vmatpush1.msra.mxu0 0.0
    %535 = vmatprep.subr.mxu0 0.0
    %536 = vmatpush1.msra.mxu0 0.0
    %537 = vmatprep.subr.mxu0 0.0
    %538 = vmatpush1.msra.mxu0 0.0
    %539 = vmatprep.subr.mxu0 0.0
    %540 = vmatpush1.msra.mxu0 0.0
    %541 = vmatprep.subr.mxu0 0.0
    %542 = vmatpush1.msra.mxu0 0.0
    %543 = vmatprep.subr.mxu0 0.0
    %544 = vmatpush1.msra.mxu0 0.0
    %545 = vmatprep.subr.mxu0 0.0
    %546 = vmatpush1.msra.mxu0 0.0
    %547 = vmatprep.subr.mxu0 0.0
    %548 = vmatpush1.msra.mxu0 0.0
    %549 = vmatprep.subr.mxu0 0.0
    %550 = vmatpush1.msra.mxu0 0.0
    %551 = vmatprep.subr.mxu0 0.0
    %552 = vmatpush1.msra.mxu0 0.0
    %553 = vmatprep.subr.mxu0 0.0
    %554 = vmatpush1.msra.mxu0 0.0
    %555 = vmatprep.subr.mxu0 0.0
    %556 = vmatpush1.msra.mxu0 0.0
    %557 = vmatprep.subr.mxu0 0.0
    %558 = vmatpush1.msra.mxu0 0.0
    %559 = vmatprep.subr.mxu0 0.0
    %560 = vmatpush1.msra.mxu0 0.0
    %561 = vmatprep.subr.mxu0 0.0
    %562 = vmatpush1.msra.mxu0 0.0
    %563 = vmatprep.subr.mxu0 0.0
    %564 = vmatpush1.msra.mxu0 0.0
    %565 = vmatprep.subr.mxu0 0.0
    %566 = vmatpush1.msra.mxu0 0.0
    %567 = vmatprep.subr.mxu0 0.0
    %568 = vmatpush1.msra.mxu0 0.0
    %569 = vmatprep.subr.mxu0 0.0
    %570 = vmatpush1.msra.mxu0 0.0
    %571 = vmatprep.subr.mxu0 0.0
    %572 = vmatpush1.msra.mxu0 0.0
    %573 = vmatprep.subr.mxu0 0.0
    %574 = vmatpush1.msra.mxu0 0.0
    %575 = vmatprep.mubr.f32.mxu0 0.0
    %v576 = vand.u32 %v104, 4294901760
    %577 = vmatmul.mubr.f32.gmra.mrb[0].mxu0 %v576
    %v578 = vpop.f32.mrb[0].mxu0
    %v579 = vadd.f32 %v481, %v578
    %v580 = vpop.f32.mrb[0].mxu0
    %581 = vmatprep.mubr.f32.mxu0 0.0
    %v582 = vand.u32 %v107, 4294901760
    %583 = vmatmul.mubr.f32.gmra.mrb[0].mxu0 %v582
    %v584 = vpop.f32.mrb[0].mxu0
    %v585 = vadd.f32 %v489, %v584
    %v586 = vpop.f32.mrb[0].mxu0
    %587 = vmatprep.mubr.f32.mxu0 0.0
    %v588 = vand.u32 %v110, 4294901760
    %589 = vmatmul.mubr.f32.gmra.mrb[0].mxu0 %v588
    %v590 = vpop.f32.mrb[0].mxu0
    %v591 = vadd.f32 %v497, %v590
    %v592 = vpop.f32.mrb[0].mxu0
    %593 = vmatprep.mubr.f32.mxu0 0.0
    %v594 = vand.u32 %v113, 4294901760
    %595 = vmatmul.mubr.f32.gmra.mrb[0].mxu0 %v594
    %v596 = vpop.f32.mrb[0].mxu0
    %v597 = vadd.f32 %v505, %v596
    %v598 = vpop.f32.mrb[0].mxu0
    %599 = vdwg.mxu0
    %600 = vmatprep.subr.mxu0 0.0
    %v601 = vand.u32 %v26, 4294901760
    %602 = vmatpush1.msra.mxu0 %v601
    %603 = vmatprep.subr.mxu0 0.0
    %604 = vmatpush1.msra.mxu0 0.0
    %605 = vmatprep.subr.mxu0 0.0
    %606 = vmatpush1.msra.mxu0 0.0
    %607 = vmatprep.subr.mxu0 0.0
    %608 = vmatpush1.msra.mxu0 0.0
    %609 = vmatprep.subr.mxu0 0.0
    %610 = vmatpush1.msra.mxu0 0.0
    %611 = vmatprep.subr.mxu0 0.0
    %612 = vmatpush1.msra.mxu0 0.0
    %613 = vmatprep.subr.mxu0 0.0
    %614 = vmatpush1.msra.mxu0 0.0
    %615 = vmatprep.subr.mxu0 0.0
    %616 = vmatpush1.msra.mxu0 0.0
    %617 = vmatprep.subr.mxu0 0.0
    %618 = vmatpush1.msra.mxu0 0.0
    %619 = vmatprep.subr.mxu0 0.0
    %620 = vmatpush1.msra.mxu0 0.0
    %621 = vmatprep.subr.mxu0 0.0
    %622 = vmatpush1.msra.mxu0 0.0
    %623 = vmatprep.subr.mxu0 0.0
    %624 = vmatpush1.msra.mxu0 0.0
    %625 = vmatprep.subr.mxu0 0.0
    %626 = vmatpush1.msra.mxu0 0.0
    %627 = vmatprep.subr.mxu0 0.0
    %628 = vmatpush1.msra.mxu0 0.0
    %629 = vmatprep.subr.mxu0 0.0
    %630 = vmatpush1.msra.mxu0 0.0
    %631 = vmatprep.subr.mxu0 0.0
    %632 = vmatpush1.msra.mxu0 0.0
    %633 = vmatprep.subr.mxu0 0.0
    %634 = vmatpush1.msra.mxu0 0.0
    %635 = vmatprep.subr.mxu0 0.0
    %636 = vmatpush1.msra.mxu0 0.0
    %637 = vmatprep.subr.mxu0 0.0
    %638 = vmatpush1.msra.mxu0 0.0
    %639 = vmatprep.subr.mxu0 0.0
    %640 = vmatpush1.msra.mxu0 0.0
    %641 = vmatprep.subr.mxu0 0.0
    %642 = vmatpush1.msra.mxu0 0.0
    %643 = vmatprep.subr.mxu0 0.0
    %644 = vmatpush1.msra.mxu0 0.0
    %645 = vmatprep.subr.mxu0 0.0
    %646 = vmatpush1.msra.mxu0 0.0
    %647 = vmatprep.subr.mxu0 0.0
    %648 = vmatpush1.msra.mxu0 0.0
    %649 = vmatprep.subr.mxu0 0.0
    %650 = vmatpush1.msra.mxu0 0.0
    %651 = vmatprep.subr.mxu0 0.0
    %652 = vmatpush1.msra.mxu0 0.0
    %653 = vmatprep.subr.mxu0 0.0
    %654 = vmatpush1.msra.mxu0 0.0
    %655 = vmatprep.subr.mxu0 0.0
    %656 = vmatpush1.msra.mxu0 0.0
    %657 = vmatprep.subr.mxu0 0.0
    %658 = vmatpush1.msra.mxu0 0.0
    %659 = vmatprep.subr.mxu0 0.0
    %660 = vmatpush1.msra.mxu0 0.0
    %661 = vmatprep.subr.mxu0 0.0
    %662 = vmatpush1.msra.mxu0 0.0
    %663 = vmatprep.subr.mxu0 0.0
    %664 = vmatpush1.msra.mxu0 0.0
    %665 = vmatprep.mubr.f32.mxu0 0.0
    %v666 = vand.u32 %v104, 4294901760
    %667 = vmatmul.mubr.f32.gmra.mrb[0].mxu0 %v666
    %v668 = vpop.f32.mrb[0].mxu0
    %v669 = vadd.f32 %v579, %v668
    %v670 = vpop.f32.mrb[0].mxu0
    %671 = vmatprep.mubr.f32.mxu0 0.0
    %v672 = vand.u32 %v107, 4294901760
    %673 = vmatmul.mubr.f32.gmra.mrb[0].mxu0 %v672
    %v674 = vpop.f32.mrb[0].mxu0
    %v675 = vadd.f32 %v585, %v674
    %v676 = vpop.f32.mrb[0].mxu0
    %677 = vmatprep.mubr.f32.mxu0 0.0
    %v678 = vand.u32 %v110, 4294901760
    %679 = vmatmul.mubr.f32.gmra.mrb[0].mxu0 %v678
    %v680 = vpop.f32.mrb[0].mxu0
    %v681 = vadd.f32 %v591, %v680
    %v682 = vpop.f32.mrb[0].mxu0
    %683 = vmatprep.mubr.f32.mxu0 0.0
    %v684 = vand.u32 %v113, 4294901760
    %685 = vmatmul.mubr.f32.gmra.mrb[0].mxu0 %v684
    %v686 = vpop.f32.mrb[0].mxu0
    %v687 = vadd.f32 %v597, %v686
    %v688 = vpop.f32.mrb[0].mxu0
    %689 = vdwg.mxu0
    %690 = vxpose.xlu0.b32.start [1/16] %v69, 128
    %691 = vxpose.xlu0.b32.cont [2/16] 0.0, 128
    %692 = vxpose.xlu0.b32.cont [3/16] 0.0, 128
    %693 = vxpose.xlu0.b32.cont [4/16] 0.0, 128
    %694 = vxpose.xlu0.b32.cont [5/16] 0.0, 128
    %695 = vxpose.xlu0.b32.cont [6/16] 0.0, 128
    %696 = vxpose.xlu0.b32.cont [7/16] 0.0, 128
    %697 = vxpose.xlu0.b32.cont [8/16] 0.0, 128
    %698 = vxpose.xlu0.b32.cont [9/16] 0.0, 128
    %699 = vxpose.xlu0.b32.cont [10/16] 0.0, 128
    %700 = vxpose.xlu0.b32.cont [11/16] 0.0, 128
    %701 = vxpose.xlu0.b32.cont [12/16] 0.0, 128
    %702 = vxpose.xlu0.b32.cont [13/16] 0.0, 128
    %703 = vxpose.xlu0.b32.cont [14/16] 0.0, 128
    %704 = vxpose.xlu0.b32.cont [15/16] 0.0, 128
    %705 = vxpose.xlu0.b32.end [16/16] 0.0, 128
    %v706 = vpop.trf.xlu0
    %v707 = vpop.trf.xlu0
    %v708 = vpop.trf.xlu0
    %v709 = vpop.trf.xlu0
    %v710 = vpop.trf.xlu0
    %v711 = vpop.trf.xlu0
    %v712 = vpop.trf.xlu0
    %v713 = vpop.trf.xlu0
    %v714 = vpop.trf.xlu0
    %v715 = vpop.trf.xlu0
    %v716 = vpop.trf.xlu0
    %v717 = vpop.trf.xlu0
    %v718 = vpop.trf.xlu0
    %v719 = vpop.trf.xlu0
    %v720 = vpop.trf.xlu0
    %v721 = vpop.trf.xlu0
    %v723 = vsel %vm102, %v706, 0
    %v726 = vsel %vm102, %v707, 0
    %v729 = vsel %vm102, %v708, 0
    %v732 = vsel %vm102, %v709, 0
    %734 = vmatprep.subr.mxu0 0.0
    %v735 = vand.u32 %v26, 4294901760
    %736 = vmatpush1.msra.mxu0 %v735
    %737 = vmatprep.subr.mxu0 0.0
    %738 = vmatpush1.msra.mxu0 0.0
    %739 = vmatprep.subr.mxu0 0.0
    %740 = vmatpush1.msra.mxu0 0.0
    %741 = vmatprep.subr.mxu0 0.0
    %742 = vmatpush1.msra.mxu0 0.0
    %743 = vmatprep.subr.mxu0 0.0
    %744 = vmatpush1.msra.mxu0 0.0
    %745 = vmatprep.subr.mxu0 0.0
    %746 = vmatpush1.msra.mxu0 0.0
    %747 = vmatprep.subr.mxu0 0.0
    %748 = vmatpush1.msra.mxu0 0.0
    %749 = vmatprep.subr.mxu0 0.0
    %750 = vmatpush1.msra.mxu0 0.0
    %751 = vmatprep.subr.mxu0 0.0
    %752 = vmatpush1.msra.mxu0 0.0
    %753 = vmatprep.subr.mxu0 0.0
    %754 = vmatpush1.msra.mxu0 0.0
    %755 = vmatprep.subr.mxu0 0.0
    %756 = vmatpush1.msra.mxu0 0.0
    %757 = vmatprep.subr.mxu0 0.0
    %758 = vmatpush1.msra.mxu0 0.0
    %759 = vmatprep.subr.mxu0 0.0
    %760 = vmatpush1.msra.mxu0 0.0
    %761 = vmatprep.subr.mxu0 0.0
    %762 = vmatpush1.msra.mxu0 0.0
    %763 = vmatprep.subr.mxu0 0.0
    %764 = vmatpush1.msra.mxu0 0.0
    %765 = vmatprep.subr.mxu0 0.0
    %766 = vmatpush1.msra.mxu0 0.0
    %767 = vmatprep.subr.mxu0 0.0
    %768 = vmatpush1.msra.mxu0 0.0
    %769 = vmatprep.subr.mxu0 0.0
    %770 = vmatpush1.msra.mxu0 0.0
    %771 = vmatprep.subr.mxu0 0.0
    %772 = vmatpush1.msra.mxu0 0.0
    %773 = vmatprep.subr.mxu0 0.0
    %774 = vmatpush1.msra.mxu0 0.0
    %775 = vmatprep.subr.mxu0 0.0
    %776 = vmatpush1.msra.mxu0 0.0
    %777 = vmatprep.subr.mxu0 0.0
    %778 = vmatpush1.msra.mxu0 0.0
    %779 = vmatprep.subr.mxu0 0.0
    %780 = vmatpush1.msra.mxu0 0.0
    %781 = vmatprep.subr.mxu0 0.0
    %782 = vmatpush1.msra.mxu0 0.0
    %783 = vmatprep.subr.mxu0 0.0
    %784 = vmatpush1.msra.mxu0 0.0
    %785 = vmatprep.subr.mxu0 0.0
    %786 = vmatpush1.msra.mxu0 0.0
    %787 = vmatprep.subr.mxu0 0.0
    %788 = vmatpush1.msra.mxu0 0.0
    %789 = vmatprep.subr.mxu0 0.0
    %790 = vmatpush1.msra.mxu0 0.0
    %791 = vmatprep.subr.mxu0 0.0
    %792 = vmatpush1.msra.mxu0 0.0
    %793 = vmatprep.subr.mxu0 0.0
    %794 = vmatpush1.msra.mxu0 0.0
    %795 = vmatprep.subr.mxu0 0.0
    %796 = vmatpush1.msra.mxu0 0.0
    %797 = vmatprep.subr.mxu0 0.0
    %798 = vmatpush1.msra.mxu0 0.0
    %799 = vmatprep.mubr.f32.mxu0 0.0
    %v800 = vand.u32 %v723, 4294901760
    %v801 = vsub.f32 %v723, %v800
    %v802 = vand.u32 %v801, 4294901760
    %v803 = vsub.f32 %v801, %v802
    %v804 = vand.u32 %v803, 4294901760
    %805 = vmatmul.mubr.f32.gmra.mrb[0].mxu0 %v804
    %v806 = vpop.f32.mrb[0].mxu0
    %v807 = vadd.f32 0.0, %v806
    %v808 = vpop.f32.mrb[0].mxu0
    %809 = vmatprep.mubr.f32.mxu0 0.0
    %v810 = vand.u32 %v726, 4294901760
    %v811 = vsub.f32 %v726, %v810
    %v812 = vand.u32 %v811, 4294901760
    %v813 = vsub.f32 %v811, %v812
    %v814 = vand.u32 %v813, 4294901760
    %815 = vmatmul.mubr.f32.gmra.mrb[0].mxu0 %v814
    %v816 = vpop.f32.mrb[0].mxu0
    %v817 = vadd.f32 0.0, %v816
    %v818 = vpop.f32.mrb[0].mxu0
    %819 = vmatprep.mubr.f32.mxu0 0.0
    %v820 = vand.u32 %v729, 4294901760
    %v821 = vsub.f32 %v729, %v820
    %v822 = vand.u32 %v821, 4294901760
    %v823 = vsub.f32 %v821, %v822
    %v824 = vand.u32 %v823, 4294901760
    %825 = vmatmul.mubr.f32.gmra.mrb[0].mxu0 %v824
    %v826 = vpop.f32.mrb[0].mxu0
    %v827 = vadd.f32 0.0, %v826
    %v828 = vpop.f32.mrb[0].mxu0
    %829 = vmatprep.mubr.f32.mxu0 0.0
    %v830 = vand.u32 %v732, 4294901760
    %v831 = vsub.f32 %v732, %v830
    %v832 = vand.u32 %v831, 4294901760
    %v833 = vsub.f32 %v831, %v832
    %v834 = vand.u32 %v833, 4294901760
    %835 = vmatmul.mubr.f32.gmra.mrb[0].mxu0 %v834
    %v836 = vpop.f32.mrb[0].mxu0
    %v837 = vadd.f32 0.0, %v836
    %v838 = vpop.f32.mrb[0].mxu0
    %839 = vdwg.mxu0
    %840 = vmatprep.subr.mxu0 0.0
    %v841 = vand.u32 %v26, 4294901760
    %v842 = vsub.f32 %v26, %v841
    %v843 = vand.u32 %v842, 4294901760
    %v844 = vsub.f32 %v842, %v843
    %v845 = vand.u32 %v844, 4294901760
    %846 = vmatpush1.msra.mxu0 %v845
    %847 = vmatprep.subr.mxu0 0.0
    %848 = vmatpush1.msra.mxu0 0.0
    %849 = vmatprep.subr.mxu0 0.0
    %850 = vmatpush1.msra.mxu0 0.0
    %851 = vmatprep.subr.mxu0 0.0
    %852 = vmatpush1.msra.mxu0 0.0
    %853 = vmatprep.subr.mxu0 0.0
    %854 = vmatpush1.msra.mxu0 0.0
    %855 = vmatprep.subr.mxu0 0.0
    %856 = vmatpush1.msra.mxu0 0.0
    %857 = vmatprep.subr.mxu0 0.0
    %858 = vmatpush1.msra.mxu0 0.0
    %859 = vmatprep.subr.mxu0 0.0
    %860 = vmatpush1.msra.mxu0 0.0
    %861 = vmatprep.subr.mxu0 0.0
    %862 = vmatpush1.msra.mxu0 0.0
    %863 = vmatprep.subr.mxu0 0.0
    %864 = vmatpush1.msra.mxu0 0.0
    %865 = vmatprep.subr.mxu0 0.0
    %866 = vmatpush1.msra.mxu0 0.0
    %867 = vmatprep.subr.mxu0 0.0
    %868 = vmatpush1.msra.mxu0 0.0
    %869 = vmatprep.subr.mxu0 0.0
    %870 = vmatpush1.msra.mxu0 0.0
    %871 = vmatprep.subr.mxu0 0.0
    %872 = vmatpush1.msra.mxu0 0.0
    %873 = vmatprep.subr.mxu0 0.0
    %874 = vmatpush1.msra.mxu0 0.0
    %875 = vmatprep.subr.mxu0 0.0
    %876 = vmatpush1.msra.mxu0 0.0
    %877 = vmatprep.subr.mxu0 0.0
    %878 = vmatpush1.msra.mxu0 0.0
    %879 = vmatprep.subr.mxu0 0.0
    %880 = vmatpush1.msra.mxu0 0.0
    %881 = vmatprep.subr.mxu0 0.0
    %882 = vmatpush1.msra.mxu0 0.0
    %883 = vmatprep.subr.mxu0 0.0
    %884 = vmatpush1.msra.mxu0 0.0
    %885 = vmatprep.subr.mxu0 0.0
    %886 = vmatpush1.msra.mxu0 0.0
    %887 = vmatprep.subr.mxu0 0.0
    %888 = vmatpush1.msra.mxu0 0.0
    %889 = vmatprep.subr.mxu0 0.0
    %890 = vmatpush1.msra.mxu0 0.0
    %891 = vmatprep.subr.mxu0 0.0
    %892 = vmatpush1.msra.mxu0 0.0
    %893 = vmatprep.subr.mxu0 0.0
    %894 = vmatpush1.msra.mxu0 0.0
    %895 = vmatprep.subr.mxu0 0.0
    %896 = vmatpush1.msra.mxu0 0.0
    %897 = vmatprep.subr.mxu0 0.0
    %898 = vmatpush1.msra.mxu0 0.0
    %899 = vmatprep.subr.mxu0 0.0
    %900 = vmatpush1.msra.mxu0 0.0
    %901 = vmatprep.subr.mxu0 0.0
    %902 = vmatpush1.msra.mxu0 0.0
    %903 = vmatprep.subr.mxu0 0.0
    %904 = vmatpush1.msra.mxu0 0.0
    %905 = vmatprep.subr.mxu0 0.0
    %906 = vmatpush1.msra.mxu0 0.0
    %907 = vmatprep.subr.mxu0 0.0
    %908 = vmatpush1.msra.mxu0 0.0
    %909 = vmatprep.mubr.f32.mxu0 0.0
    %v910 = vand.u32 %v723, 4294901760
    %911 = vmatmul.mubr.f32.gmra.mrb[0].mxu0 %v910
    %v912 = vpop.f32.mrb[0].mxu0
    %v913 = vadd.f32 %v807, %v912
    %v914 = vpop.f32.mrb[0].mxu0
    %915 = vmatprep.mubr.f32.mxu0 0.0
    %v916 = vand.u32 %v726, 4294901760
    %917 = vmatmul.mubr.f32.gmra.mrb[0].mxu0 %v916
    %v918 = vpop.f32.mrb[0].mxu0
    %v919 = vadd.f32 %v817, %v918
    %v920 = vpop.f32.mrb[0].mxu0
    %921 = vmatprep.mubr.f32.mxu0 0.0
    %v922 = vand.u32 %v729, 4294901760
    %923 = vmatmul.mubr.f32.gmra.mrb[0].mxu0 %v922
    %v924 = vpop.f32.mrb[0].mxu0
    %v925 = vadd.f32 %v827, %v924
    %v926 = vpop.f32.mrb[0].mxu0
    %927 = vmatprep.mubr.f32.mxu0 0.0
    %v928 = vand.u32 %v732, 4294901760
    %929 = vmatmul.mubr.f32.gmra.mrb[0].mxu0 %v928
    %v930 = vpop.f32.mrb[0].mxu0
    %v931 = vadd.f32 %v837, %v930
    %v932 = vpop.f32.mrb[0].mxu0
    %933 = vdwg.mxu0
    %934 = vmatprep.subr.mxu0 0.0
    %v935 = vand.u32 %v26, 4294901760
    %v936 = vsub.f32 %v26, %v935
    %937 = vmatpush1.msra.mxu0 %v936
    %938 = vmatprep.subr.mxu0 0.0
    %939 = vmatpush1.msra.mxu0 0.0
    %940 = vmatprep.subr.mxu0 0.0
    %941 = vmatpush1.msra.mxu0 0.0
    %942 = vmatprep.subr.mxu0 0.0
    %943 = vmatpush1.msra.mxu0 0.0
    %944 = vmatprep.subr.mxu0 0.0
    %945 = vmatpush1.msra.mxu0 0.0
    %946 = vmatprep.subr.mxu0 0.0
    %947 = vmatpush1.msra.mxu0 0.0
    %948 = vmatprep.subr.mxu0 0.0
    %949 = vmatpush1.msra.mxu0 0.0
    %950 = vmatprep.subr.mxu0 0.0
    %951 = vmatpush1.msra.mxu0 0.0
    %952 = vmatprep.subr.mxu0 0.0
    %953 = vmatpush1.msra.mxu0 0.0
    %954 = vmatprep.subr.mxu0 0.0
    %955 = vmatpush1.msra.mxu0 0.0
    %956 = vmatprep.subr.mxu0 0.0
    %957 = vmatpush1.msra.mxu0 0.0
    %958 = vmatprep.subr.mxu0 0.0
    %959 = vmatpush1.msra.mxu0 0.0
    %960 = vmatprep.subr.mxu0 0.0
    %961 = vmatpush1.msra.mxu0 0.0
    %962 = vmatprep.subr.mxu0 0.0
    %963 = vmatpush1.msra.mxu0 0.0
    %964 = vmatprep.subr.mxu0 0.0
    %965 = vmatpush1.msra.mxu0 0.0
    %966 = vmatprep.subr.mxu0 0.0
    %967 = vmatpush1.msra.mxu0 0.0
    %968 = vmatprep.subr.mxu0 0.0
    %969 = vmatpush1.msra.mxu0 0.0
    %970 = vmatprep.subr.mxu0 0.0
    %971 = vmatpush1.msra.mxu0 0.0
    %972 = vmatprep.subr.mxu0 0.0
    %973 = vmatpush1.msra.mxu0 0.0
    %974 = vmatprep.subr.mxu0 0.0
    %975 = vmatpush1.msra.mxu0 0.0
    %976 = vmatprep.subr.mxu0 0.0
    %977 = vmatpush1.msra.mxu0 0.0
    %978 = vmatprep.subr.mxu0 0.0
    %979 = vmatpush1.msra.mxu0 0.0
    %980 = vmatprep.subr.mxu0 0.0
    %981 = vmatpush1.msra.mxu0 0.0
    %982 = vmatprep.subr.mxu0 0.0
    %983 = vmatpush1.msra.mxu0 0.0
    %984 = vmatprep.subr.mxu0 0.0
    %985 = vmatpush1.msra.mxu0 0.0
    %986 = vmatprep.subr.mxu0 0.0
    %987 = vmatpush1.msra.mxu0 0.0
    %988 = vmatprep.subr.mxu0 0.0
    %989 = vmatpush1.msra.mxu0 0.0
    %990 = vmatprep.subr.mxu0 0.0
    %991 = vmatpush1.msra.mxu0 0.0
    %992 = vmatprep.subr.mxu0 0.0
    %993 = vmatpush1.msra.mxu0 0.0
    %994 = vmatprep.subr.mxu0 0.0
    %995 = vmatpush1.msra.mxu0 0.0
    %996 = vmatprep.subr.mxu0 0.0
    %997 = vmatpush1.msra.mxu0 0.0
    %998 = vmatprep.subr.mxu0 0.0
    %999 = vmatpush1.msra.mxu0 0.0
    %1000 = vmatprep.mubr.f32.mxu0 0.0
    %v1001 = vand.u32 %v723, 4294901760
    %v1002 = vsub.f32 %v723, %v1001
    %1003 = vmatmul.mubr.f32.gmra.mrb[0].mxu0 %v1002
    %v1004 = vpop.f32.mrb[0].mxu0
    %v1005 = vadd.f32 %v913, %v1004
    %v1006 = vpop.f32.mrb[0].mxu0
    %1007 = vmatprep.mubr.f32.mxu0 0.0
    %v1008 = vand.u32 %v726, 4294901760
    %v1009 = vsub.f32 %v726, %v1008
    %1010 = vmatmul.mubr.f32.gmra.mrb[0].mxu0 %v1009
    %v1011 = vpop.f32.mrb[0].mxu0
    %v1012 = vadd.f32 %v919, %v1011
    %v1013 = vpop.f32.mrb[0].mxu0
    %1014 = vmatprep.mubr.f32.mxu0 0.0
    %v1015 = vand.u32 %v729, 4294901760
    %v1016 = vsub.f32 %v729, %v1015
    %1017 = vmatmul.mubr.f32.gmra.mrb[0].mxu0 %v1016
    %v1018 = vpop.f32.mrb[0].mxu0
    %v1019 = vadd.f32 %v925, %v1018
    %v1020 = vpop.f32.mrb[0].mxu0
    %1021 = vmatprep.mubr.f32.mxu0 0.0
    %v1022 = vand.u32 %v732, 4294901760
    %v1023 = vsub.f32 %v732, %v1022
    %1024 = vmatmul.mubr.f32.gmra.mrb[0].mxu0 %v1023
    %v1025 = vpop.f32.mrb[0].mxu0
    %v1026 = vadd.f32 %v931, %v1025
    %v1027 = vpop.f32.mrb[0].mxu0
    %1028 = vdwg.mxu0
    %1029 = vmatprep.subr.mxu0 0.0
    %v1030 = vand.u32 %v26, 4294901760
    %1031 = vmatpush1.msra.mxu0 %v1030
    %1032 = vmatprep.subr.mxu0 0.0
    %1033 = vmatpush1.msra.mxu0 0.0
    %1034 = vmatprep.subr.mxu0 0.0
    %1035 = vmatpush1.msra.mxu0 0.0
    %1036 = vmatprep.subr.mxu0 0.0
    %1037 = vmatpush1.msra.mxu0 0.0
    %1038 = vmatprep.subr.mxu0 0.0
    %1039 = vmatpush1.msra.mxu0 0.0
    %1040 = vmatprep.subr.mxu0 0.0
    %1041 = vmatpush1.msra.mxu0 0.0
    %1042 = vmatprep.subr.mxu0 0.0
    %1043 = vmatpush1.msra.mxu0 0.0
    %1044 = vmatprep.subr.mxu0 0.0
    %1045 = vmatpush1.msra.mxu0 0.0
    %1046 = vmatprep.subr.mxu0 0.0
    %1047 = vmatpush1.msra.mxu0 0.0
    %1048 = vmatprep.subr.mxu0 0.0
    %1049 = vmatpush1.msra.mxu0 0.0
    %1050 = vmatprep.subr.mxu0 0.0
    %1051 = vmatpush1.msra.mxu0 0.0
    %1052 = vmatprep.subr.mxu0 0.0
    %1053 = vmatpush1.msra.mxu0 0.0
    %1054 = vmatprep.subr.mxu0 0.0
    %1055 = vmatpush1.msra.mxu0 0.0
    %1056 = vmatprep.subr.mxu0 0.0
    %1057 = vmatpush1.msra.mxu0 0.0
    %1058 = vmatprep.subr.mxu0 0.0
    %1059 = vmatpush1.msra.mxu0 0.0
    %1060 = vmatprep.subr.mxu0 0.0
    %1061 = vmatpush1.msra.mxu0 0.0
    %1062 = vmatprep.subr.mxu0 0.0
    %1063 = vmatpush1.msra.mxu0 0.0
    %1064 = vmatprep.subr.mxu0 0.0
    %1065 = vmatpush1.msra.mxu0 0.0
    %1066 = vmatprep.subr.mxu0 0.0
    %1067 = vmatpush1.msra.mxu0 0.0
    %1068 = vmatprep.subr.mxu0 0.0
    %1069 = vmatpush1.msra.mxu0 0.0
    %1070 = vmatprep.subr.mxu0 0.0
    %1071 = vmatpush1.msra.mxu0 0.0
    %1072 = vmatprep.subr.mxu0 0.0
    %1073 = vmatpush1.msra.mxu0 0.0
    %1074 = vmatprep.subr.mxu0 0.0
    %1075 = vmatpush1.msra.mxu0 0.0
    %1076 = vmatprep.subr.mxu0 0.0
    %1077 = vmatpush1.msra.mxu0 0.0
    %1078 = vmatprep.subr.mxu0 0.0
    %1079 = vmatpush1.msra.mxu0 0.0
    %1080 = vmatprep.subr.mxu0 0.0
    %1081 = vmatpush1.msra.mxu0 0.0
    %1082 = vmatprep.subr.mxu0 0.0
    %1083 = vmatpush1.msra.mxu0 0.0
    %1084 = vmatprep.subr.mxu0 0.0
    %1085 = vmatpush1.msra.mxu0 0.0
    %1086 = vmatprep.subr.mxu0 0.0
    %1087 = vmatpush1.msra.mxu0 0.0
    %1088 = vmatprep.subr.mxu0 0.0
    %1089 = vmatpush1.msra.mxu0 0.0
    %1090 = vmatprep.subr.mxu0 0.0
    %1091 = vmatpush1.msra.mxu0 0.0
    %1092 = vmatprep.subr.mxu0 0.0
    %1093 = vmatpush1.msra.mxu0 0.0
    %1094 = vmatprep.mubr.f32.mxu0 0.0
    %v1095 = vand.u32 %v723, 4294901760
    %v1096 = vsub.f32 %v723, %v1095
    %v1097 = vand.u32 %v1096, 4294901760
    %1098 = vmatmul.mubr.f32.gmra.mrb[0].mxu0 %v1097
    %v1099 = vpop.f32.mrb[0].mxu0
    %v1100 = vadd.f32 %v1005, %v1099
    %v1101 = vpop.f32.mrb[0].mxu0
    %1102 = vmatprep.mubr.f32.mxu0 0.0
    %v1103 = vand.u32 %v726, 4294901760
    %v1104 = vsub.f32 %v726, %v1103
    %v1105 = vand.u32 %v1104, 4294901760
    %1106 = vmatmul.mubr.f32.gmra.mrb[0].mxu0 %v1105
    %v1107 = vpop.f32.mrb[0].mxu0
    %v1108 = vadd.f32 %v1012, %v1107
    %v1109 = vpop.f32.mrb[0].mxu0
    %1110 = vmatprep.mubr.f32.mxu0 0.0
    %v1111 = vand.u32 %v729, 4294901760
    %v1112 = vsub.f32 %v729, %v1111
    %v1113 = vand.u32 %v1112, 4294901760
    %1114 = vmatmul.mubr.f32.gmra.mrb[0].mxu0 %v1113
    %v1115 = vpop.f32.mrb[0].mxu0
    %v1116 = vadd.f32 %v1019, %v1115
    %v1117 = vpop.f32.mrb[0].mxu0
    %1118 = vmatprep.mubr.f32.mxu0 0.0
    %v1119 = vand.u32 %v732, 4294901760
    %v1120 = vsub.f32 %v732, %v1119
    %v1121 = vand.u32 %v1120, 4294901760
    %1122 = vmatmul.mubr.f32.gmra.mrb[0].mxu0 %v1121
    %v1123 = vpop.f32.mrb[0].mxu0
    %v1124 = vadd.f32 %v1026, %v1123
    %v1125 = vpop.f32.mrb[0].mxu0
    %1126 = vdwg.mxu0
    %1127 = vmatprep.subr.mxu0 0.0
    %v1128 = vand.u32 %v26, 4294901760
    %v1129 = vsub.f32 %v26, %v1128
    %v1130 = vand.u32 %v1129, 4294901760
    %1131 = vmatpush1.msra.mxu0 %v1130
    %1132 = vmatprep.subr.mxu0 0.0
    %1133 = vmatpush1.msra.mxu0 0.0
    %1134 = vmatprep.subr.mxu0 0.0
    %1135 = vmatpush1.msra.mxu0 0.0
    %1136 = vmatprep.subr.mxu0 0.0
    %1137 = vmatpush1.msra.mxu0 0.0
    %1138 = vmatprep.subr.mxu0 0.0
    %1139 = vmatpush1.msra.mxu0 0.0
    %1140 = vmatprep.subr.mxu0 0.0
    %1141 = vmatpush1.msra.mxu0 0.0
    %1142 = vmatprep.subr.mxu0 0.0
    %1143 = vmatpush1.msra.mxu0 0.0
    %1144 = vmatprep.subr.mxu0 0.0
    %1145 = vmatpush1.msra.mxu0 0.0
    %1146 = vmatprep.subr.mxu0 0.0
    %1147 = vmatpush1.msra.mxu0 0.0
    %1148 = vmatprep.subr.mxu0 0.0
    %1149 = vmatpush1.msra.mxu0 0.0
    %1150 = vmatprep.subr.mxu0 0.0
    %1151 = vmatpush1.msra.mxu0 0.0
    %1152 = vmatprep.subr.mxu0 0.0
    %1153 = vmatpush1.msra.mxu0 0.0
    %1154 = vmatprep.subr.mxu0 0.0
    %1155 = vmatpush1.msra.mxu0 0.0
    %1156 = vmatprep.subr.mxu0 0.0
    %1157 = vmatpush1.msra.mxu0 0.0
    %1158 = vmatprep.subr.mxu0 0.0
    %1159 = vmatpush1.msra.mxu0 0.0
    %1160 = vmatprep.subr.mxu0 0.0
    %1161 = vmatpush1.msra.mxu0 0.0
    %1162 = vmatprep.subr.mxu0 0.0
    %1163 = vmatpush1.msra.mxu0 0.0
    %1164 = vmatprep.subr.mxu0 0.0
    %1165 = vmatpush1.msra.mxu0 0.0
    %1166 = vmatprep.subr.mxu0 0.0
    %1167 = vmatpush1.msra.mxu0 0.0
    %1168 = vmatprep.subr.mxu0 0.0
    %1169 = vmatpush1.msra.mxu0 0.0
    %1170 = vmatprep.subr.mxu0 0.0
    %1171 = vmatpush1.msra.mxu0 0.0
    %1172 = vmatprep.subr.mxu0 0.0
    %1173 = vmatpush1.msra.mxu0 0.0
    %1174 = vmatprep.subr.mxu0 0.0
    %1175 = vmatpush1.msra.mxu0 0.0
    %1176 = vmatprep.subr.mxu0 0.0
    %1177 = vmatpush1.msra.mxu0 0.0
    %1178 = vmatprep.subr.mxu0 0.0
    %1179 = vmatpush1.msra.mxu0 0.0
    %1180 = vmatprep.subr.mxu0 0.0
    %1181 = vmatpush1.msra.mxu0 0.0
    %1182 = vmatprep.subr.mxu0 0.0
    %1183 = vmatpush1.msra.mxu0 0.0
    %1184 = vmatprep.subr.mxu0 0.0
    %1185 = vmatpush1.msra.mxu0 0.0
    %1186 = vmatprep.subr.mxu0 0.0
    %1187 = vmatpush1.msra.mxu0 0.0
    %1188 = vmatprep.subr.mxu0 0.0
    %1189 = vmatpush1.msra.mxu0 0.0
    %1190 = vmatprep.subr.mxu0 0.0
    %1191 = vmatpush1.msra.mxu0 0.0
    %1192 = vmatprep.subr.mxu0 0.0
    %1193 = vmatpush1.msra.mxu0 0.0
    %1194 = vmatprep.mubr.f32.mxu0 0.0
    %v1195 = vand.u32 %v723, 4294901760
    %1196 = vmatmul.mubr.f32.gmra.mrb[0].mxu0 %v1195
    %v1197 = vpop.f32.mrb[0].mxu0
    %v1198 = vadd.f32 %v1100, %v1197
    %v1199 = vpop.f32.mrb[0].mxu0
    %1200 = vmatprep.mubr.f32.mxu0 0.0
    %v1201 = vand.u32 %v726, 4294901760
    %1202 = vmatmul.mubr.f32.gmra.mrb[0].mxu0 %v1201
    %v1203 = vpop.f32.mrb[0].mxu0
    %v1204 = vadd.f32 %v1108, %v1203
    %v1205 = vpop.f32.mrb[0].mxu0
    %1206 = vmatprep.mubr.f32.mxu0 0.0
    %v1207 = vand.u32 %v729, 4294901760
    %1208 = vmatmul.mubr.f32.gmra.mrb[0].mxu0 %v1207
    %v1209 = vpop.f32.mrb[0].mxu0
    %v1210 = vadd.f32 %v1116, %v1209
    %v1211 = vpop.f32.mrb[0].mxu0
    %1212 = vmatprep.mubr.f32.mxu0 0.0
    %v1213 = vand.u32 %v732, 4294901760
    %1214 = vmatmul.mubr.f32.gmra.mrb[0].mxu0 %v1213
    %v1215 = vpop.f32.mrb[0].mxu0
    %v1216 = vadd.f32 %v1124, %v1215
    %v1217 = vpop.f32.mrb[0].mxu0
    %1218 = vdwg.mxu0
    %1219 = vmatprep.subr.mxu0 0.0
    %v1220 = vand.u32 %v26, 4294901760
    %1221 = vmatpush1.msra.mxu0 %v1220
    %1222 = vmatprep.subr.mxu0 0.0
    %1223 = vmatpush1.msra.mxu0 0.0
    %1224 = vmatprep.subr.mxu0 0.0
    %1225 = vmatpush1.msra.mxu0 0.0
    %1226 = vmatprep.subr.mxu0 0.0
    %1227 = vmatpush1.msra.mxu0 0.0
    %1228 = vmatprep.subr.mxu0 0.0
    %1229 = vmatpush1.msra.mxu0 0.0
    %1230 = vmatprep.subr.mxu0 0.0
    %1231 = vmatpush1.msra.mxu0 0.0
    %1232 = vmatprep.subr.mxu0 0.0
    %1233 = vmatpush1.msra.mxu0 0.0
    %1234 = vmatprep.subr.mxu0 0.0
    %1235 = vmatpush1.msra.mxu0 0.0
    %1236 = vmatprep.subr.mxu0 0.0
    %1237 = vmatpush1.msra.mxu0 0.0
    %1238 = vmatprep.subr.mxu0 0.0
    %1239 = vmatpush1.msra.mxu0 0.0
    %1240 = vmatprep.subr.mxu0 0.0
    %1241 = vmatpush1.msra.mxu0 0.0
    %1242 = vmatprep.subr.mxu0 0.0
    %1243 = vmatpush1.msra.mxu0 0.0
    %1244 = vmatprep.subr.mxu0 0.0
    %1245 = vmatpush1.msra.mxu0 0.0
    %1246 = vmatprep.subr.mxu0 0.0
    %1247 = vmatpush1.msra.mxu0 0.0
    %1248 = vmatprep.subr.mxu0 0.0
    %1249 = vmatpush1.msra.mxu0 0.0
    %1250 = vmatprep.subr.mxu0 0.0
    %1251 = vmatpush1.msra.mxu0 0.0
    %1252 = vmatprep.subr.mxu0 0.0
    %1253 = vmatpush1.msra.mxu0 0.0
    %1254 = vmatprep.subr.mxu0 0.0
    %1255 = vmatpush1.msra.mxu0 0.0
    %1256 = vmatprep.subr.mxu0 0.0
    %1257 = vmatpush1.msra.mxu0 0.0
    %1258 = vmatprep.subr.mxu0 0.0
    %1259 = vmatpush1.msra.mxu0 0.0
    %1260 = vmatprep.subr.mxu0 0.0
    %1261 = vmatpush1.msra.mxu0 0.0
    %1262 = vmatprep.subr.mxu0 0.0
    %1263 = vmatpush1.msra.mxu0 0.0
    %1264 = vmatprep.subr.mxu0 0.0
    %1265 = vmatpush1.msra.mxu0 0.0
    %1266 = vmatprep.subr.mxu0 0.0
    %1267 = vmatpush1.msra.mxu0 0.0
    %1268 = vmatprep.subr.mxu0 0.0
    %1269 = vmatpush1.msra.mxu0 0.0
    %1270 = vmatprep.subr.mxu0 0.0
    %1271 = vmatpush1.msra.mxu0 0.0
    %1272 = vmatprep.subr.mxu0 0.0
    %1273 = vmatpush1.msra.mxu0 0.0
    %1274 = vmatprep.subr.mxu0 0.0
    %1275 = vmatpush1.msra.mxu0 0.0
    %1276 = vmatprep.subr.mxu0 0.0
    %1277 = vmatpush1.msra.mxu0 0.0
    %1278 = vmatprep.subr.mxu0 0.0
    %1279 = vmatpush1.msra.mxu0 0.0
    %1280 = vmatprep.subr.mxu0 0.0
    %1281 = vmatpush1.msra.mxu0 0.0
    %1282 = vmatprep.subr.mxu0 0.0
    %1283 = vmatpush1.msra.mxu0 0.0
    %1284 = vmatprep.mubr.f32.mxu0 0.0
    %v1285 = vand.u32 %v723, 4294901760
    %1286 = vmatmul.mubr.f32.gmra.mrb[0].mxu0 %v1285
    %v1287 = vpop.f32.mrb[0].mxu0
    %v1288 = vadd.f32 %v1198, %v1287
    %v1289 = vpop.f32.mrb[0].mxu0
    %1290 = vmatprep.mubr.f32.mxu0 0.0
    %v1291 = vand.u32 %v726, 4294901760
    %1292 = vmatmul.mubr.f32.gmra.mrb[0].mxu0 %v1291
    %v1293 = vpop.f32.mrb[0].mxu0
    %v1294 = vadd.f32 %v1204, %v1293
    %v1295 = vpop.f32.mrb[0].mxu0
    %1296 = vmatprep.mubr.f32.mxu0 0.0
    %v1297 = vand.u32 %v729, 4294901760
    %1298 = vmatmul.mubr.f32.gmra.mrb[0].mxu0 %v1297
    %v1299 = vpop.f32.mrb[0].mxu0
    %v1300 = vadd.f32 %v1210, %v1299
    %v1301 = vpop.f32.mrb[0].mxu0
    %1302 = vmatprep.mubr.f32.mxu0 0.0
    %v1303 = vand.u32 %v732, 4294901760
    %1304 = vmatmul.mubr.f32.gmra.mrb[0].mxu0 %v1303
    %v1305 = vpop.f32.mrb[0].mxu0
    %v1306 = vadd.f32 %v1216, %v1305
    %v1307 = vpop.f32.mrb[0].mxu0
    %1308 = vdwg.mxu0
    %v1309 = vld [vmem:[#allocation2] sm:$0xff]
    %v1310 = vld [vmem:[#allocation2 + $0x8] sm:$0xff]
    %v1311 = vld [vmem:[#allocation2 + $0x10] sm:$0xff]
    %v1312 = vld [vmem:[#allocation2 + $0x18] sm:$0xff]
    %v1313 = vmul.f32 %v1309, 0.5
    %v1314 = vmul.f32 %v1310, 0.5
    %v1315 = vmul.f32 %v1311, 0.5
    %v1316 = vmul.f32 %v1312, 0.5
    %v1317 = vtanh.pop %v1313
    %v1318 = vtanh.pop %v1314
    %v1319 = vtanh.pop %v1315
    %v1320 = vtanh.pop %v1316
    %v1321 = vadd.f32 %v1317, 1.0
    %v1322 = vadd.f32 %v1318, 1.0
    %v1323 = vadd.f32 %v1319, 1.0
    %v1324 = vadd.f32 %v1320, 1.0
    %v1325 = vmul.f32 %v1321, 0.5
    %v1326 = vmul.f32 %v1322, 0.5
    %v1327 = vmul.f32 %v1323, 0.5
    %v1328 = vmul.f32 %v1324, 0.5
    %1330 = vset.pattern.permute.xlu0 0
    %1331 = vperm.xlu0 %1330, %v669
    %v1332 = vpop.permute.xlu0 %1331
    %1335 = vset.pattern.permute.xlu0 0
    %1336 = vperm.xlu0 %1335, %v675
    %v1337 = vpop.permute.xlu0 %1336
    %1340 = vset.pattern.permute.xlu0 0
    %1341 = vperm.xlu0 %1340, %v681
    %v1342 = vpop.permute.xlu0 %1341
    %1345 = vset.pattern.permute.xlu0 0
    %1346 = vperm.xlu0 %1345, %v687
    %v1347 = vpop.permute.xlu0 %1346
    %v1349 = vmul.f32 %v1332, %v1325
    %v1350 = vmul.f32 %v1337, %v1326
    %v1351 = vmul.f32 %v1342, %v1327
    %v1352 = vmul.f32 %v1347, %v1328
    %v1353 = vadd.f32 %v1349, %v1350
    %v1354 = vadd.f32 %v1353, %v1351
    %v1355 = vadd.f32 %v1354, %v1352
    %v1356 = vrot.slane %v1355, 4
    %v1357 = vadd.f32 %v1355, %v1356
    %v1358 = vrot.slane %v1357, 2
    %v1359 = vadd.f32 %v1357, %v1358
    %v1360 = vrot.slane %v1359, 1
    %v1361 = vadd.f32 %v1359, %v1360
    %1362 = vst [vmem:[#allocation3] sm:$0x1] %v1361
    %1364 = vset.pattern.permute.xlu0 0
    %1365 = vperm.xlu0 %1364, %v1288
    %v1366 = vpop.permute.xlu0 %1365
    %1369 = vset.pattern.permute.xlu0 0
    %1370 = vperm.xlu0 %1369, %v1294
    %v1371 = vpop.permute.xlu0 %1370
    %1374 = vset.pattern.permute.xlu0 0
    %1375 = vperm.xlu0 %1374, %v1300
    %v1376 = vpop.permute.xlu0 %1375
    %1379 = vset.pattern.permute.xlu0 0
    %1380 = vperm.xlu0 %1379, %v1306
    %v1381 = vpop.permute.xlu0 %1380
    %v1383 = vlaneseq
    %v1384 = vshrl.u32 %v1383, 7
    %v1385 = vsub.s32 0, %v1384
    %v1386 = vrot.slane %v63, %v1385
    %v1387 = vmul.f32 %v1366, %v1386
    %v1388 = vmul.f32 %v1371, %v1386
    %v1389 = vmul.f32 %v1376, %v1386
    %v1390 = vmul.f32 %v1381, %v1386
    %v1391 = vadd.f32 %v1309, %v1387
    %v1392 = vadd.f32 %v1310, %v1388
    %v1393 = vadd.f32 %v1311, %v1389
    %v1394 = vadd.f32 %v1312, %v1390
    %v1395 = vmul.f32 %v1391, 0.5
    %v1396 = vmul.f32 %v1392, 0.5
    %v1397 = vmul.f32 %v1393, 0.5
    %v1398 = vmul.f32 %v1394, 0.5
    %v1399 = vtanh.pop %v1395
    %v1400 = vtanh.pop %v1396
    %v1401 = vtanh.pop %v1397
    %v1402 = vtanh.pop %v1398
    %v1403 = vadd.f32 %v1399, 1.0
    %v1404 = vadd.f32 %v1400, 1.0
    %v1405 = vadd.f32 %v1401, 1.0
    %v1406 = vadd.f32 %v1402, 1.0
    %v1407 = vmul.f32 %v1403, 0.5
    %v1408 = vmul.f32 %v1404, 0.5
    %v1409 = vmul.f32 %v1405, 0.5
    %v1410 = vmul.f32 %v1406, 0.5
    %1411 = vset.pattern.permute.xlu0 1
    %1412 = vperm.xlu0 %1411, %v669
    %v1413 = vpop.permute.xlu0 %1412
    %1415 = vset.pattern.permute.xlu0 1
    %1416 = vperm.xlu0 %1415, %v675
    %v1417 = vpop.permute.xlu0 %1416
    %1419 = vset.pattern.permute.xlu0 1
    %1420 = vperm.xlu0 %1419, %v681
    %v1421 = vpop.permute.xlu0 %1420
    %1423 = vset.pattern.permute.xlu0 1
    %1424 = vperm.xlu0 %1423, %v687
    %v1425 = vpop.permute.xlu0 %1424
    %v1427 = vmul.f32 %v1413, %v1407
    %v1428 = vmul.f32 %v1417, %v1408
    %v1429 = vmul.f32 %v1421, %v1409
    %v1430 = vmul.f32 %v1425, %v1410
    %v1431 = vadd.f32 %v1427, %v1428
    %v1432 = vadd.f32 %v1431, %v1429
    %v1433 = vadd.f32 %v1432, %v1430
    %v1434 = vrot.slane %v1433, 4
    %v1435 = vadd.f32 %v1433, %v1434
    %v1436 = vrot.slane %v1435, 2
    %v1437 = vadd.f32 %v1435, %v1436
    %v1438 = vrot.slane %v1437, 1
    %v1439 = vadd.f32 %v1437, %v1438
    %1440 = vst [vmem:[#allocation3 + $0x1] sm:$0x1] %v1439
    %1441 = vset.pattern.permute.xlu0 1
    %1442 = vperm.xlu0 %1441, %v1288
    %v1443 = vpop.permute.xlu0 %1442
    %1445 = vset.pattern.permute.xlu0 1
    %1446 = vperm.xlu0 %1445, %v1294
    %v1447 = vpop.permute.xlu0 %1446
    %1449 = vset.pattern.permute.xlu0 1
    %1450 = vperm.xlu0 %1449, %v1300
    %v1451 = vpop.permute.xlu0 %1450
    %1453 = vset.pattern.permute.xlu0 1
    %1454 = vperm.xlu0 %1453, %v1306
    %v1455 = vpop.permute.xlu0 %1454
    %v1457 = vlaneseq
    %v1458 = vshrl.u32 %v1457, 7
    %v1459 = vsub.s32 1, %v1458
    %v1460 = vrot.slane %v63, %v1459
    %v1461 = vmul.f32 %v1443, %v1460
    %v1462 = vmul.f32 %v1447, %v1460
    %v1463 = vmul.f32 %v1451, %v1460
    %v1464 = vmul.f32 %v1455, %v1460
    %v1465 = vadd.f32 %v1391, %v1461
    %v1466 = vadd.f32 %v1392, %v1462
    %v1467 = vadd.f32 %v1393, %v1463
    %v1468 = vadd.f32 %v1394, %v1464
    %v1469 = vmul.f32 %v1465, 0.5
    %v1470 = vmul.f32 %v1466, 0.5
    %v1471 = vmul.f32 %v1467, 0.5
    %v1472 = vmul.f32 %v1468, 0.5
    %v1473 = vtanh.pop %v1469
    %v1474 = vtanh.pop %v1470
    %v1475 = vtanh.pop %v1471
    %v1476 = vtanh.pop %v1472
    %v1477 = vadd.f32 %v1473, 1.0
    %v1478 = vadd.f32 %v1474, 1.0
    %v1479 = vadd.f32 %v1475, 1.0
    %v1480 = vadd.f32 %v1476, 1.0
    %v1481 = vmul.f32 %v1477, 0.5
    %v1482 = vmul.f32 %v1478, 0.5
    %v1483 = vmul.f32 %v1479, 0.5
    %v1484 = vmul.f32 %v1480, 0.5
    %1485 = vset.pattern.permute.xlu0 2
    %1486 = vperm.xlu0 %1485, %v669
    %v1487 = vpop.permute.xlu0 %1486
    %1489 = vset.pattern.permute.xlu0 2
    %1490 = vperm.xlu0 %1489, %v675
    %v1491 = vpop.permute.xlu0 %1490
    %1493 = vset.pattern.permute.xlu0 2
    %1494 = vperm.xlu0 %1493, %v681
    %v1495 = vpop.permute.xlu0 %1494
    %1497 = vset.pattern.permute.xlu0 2
    %1498 = vperm.xlu0 %1497, %v687
    %v1499 = vpop.permute.xlu0 %1498
    %v1501 = vmul.f32 %v1487, %v1481
    %v1502 = vmul.f32 %v1491, %v1482
    %v1503 = vmul.f32 %v1495, %v1483
    %v1504 = vmul.f32 %v1499, %v1484
    %v1505 = vadd.f32 %v1501, %v1502
    %v1506 = vadd.f32 %v1505, %v1503
    %v1507 = vadd.f32 %v1506, %v1504
    %v1508 = vrot.slane %v1507, 4
    %v1509 = vadd.f32 %v1507, %v1508
    %v1510 = vrot.slane %v1509, 2
    %v1511 = vadd.f32 %v1509, %v1510
    %v1512 = vrot.slane %v1511, 1
    %v1513 = vadd.f32 %v1511, %v1512
    %1514 = vst [vmem:[#allocation3 + $0x2] sm:$0x1] %v1513
    %1515 = vset.pattern.permute.xlu0 2
    %1516 = vperm.xlu0 %1515, %v1288
    %v1517 = vpop.permute.xlu0 %1516
    %1519 = vset.pattern.permute.xlu0 2
    %1520 = vperm.xlu0 %1519, %v1294
    %v1521 = vpop.permute.xlu0 %1520
    %1523 = vset.pattern.permute.xlu0 2
    %1524 = vperm.xlu0 %1523, %v1300
    %v1525 = vpop.permute.xlu0 %1524
    %1527 = vset.pattern.permute.xlu0 2
    %1528 = vperm.xlu0 %1527, %v1306
    %v1529 = vpop.permute.xlu0 %1528
    %v1531 = vlaneseq
    %v1532 = vshrl.u32 %v1531, 7
    %v1533 = vsub.s32 2, %v1532
    %v1534 = vrot.slane %v63, %v1533
    %v1535 = vmul.f32 %v1517, %v1534
    %v1536 = vmul.f32 %v1521, %v1534
    %v1537 = vmul.f32 %v1525, %v1534
    %v1538 = vmul.f32 %v1529, %v1534
    %v1539 = vadd.f32 %v1465, %v1535
    %v1540 = vadd.f32 %v1466, %v1536
    %v1541 = vadd.f32 %v1467, %v1537
    %v1542 = vadd.f32 %v1468, %v1538
    %v1543 = vmul.f32 %v1539, 0.5
    %v1544 = vmul.f32 %v1540, 0.5
    %v1545 = vmul.f32 %v1541, 0.5
    %v1546 = vmul.f32 %v1542, 0.5
    %v1547 = vtanh.pop %v1543
    %v1548 = vtanh.pop %v1544
    %v1549 = vtanh.pop %v1545
    %v1550 = vtanh.pop %v1546
    %v1551 = vadd.f32 %v1547, 1.0
    %v1552 = vadd.f32 %v1548, 1.0
    %v1553 = vadd.f32 %v1549, 1.0
    %v1554 = vadd.f32 %v1550, 1.0
    %v1555 = vmul.f32 %v1551, 0.5
    %v1556 = vmul.f32 %v1552, 0.5
    %v1557 = vmul.f32 %v1553, 0.5
    %v1558 = vmul.f32 %v1554, 0.5
    %1559 = vset.pattern.permute.xlu0 3
    %1560 = vperm.xlu0 %1559, %v669
    %v1561 = vpop.permute.xlu0 %1560
    %1563 = vset.pattern.permute.xlu0 3
    %1564 = vperm.xlu0 %1563, %v675
    %v1565 = vpop.permute.xlu0 %1564
    %1567 = vset.pattern.permute.xlu0 3
    %1568 = vperm.xlu0 %1567, %v681
    %v1569 = vpop.permute.xlu0 %1568
    %1571 = vset.pattern.permute.xlu0 3
    %1572 = vperm.xlu0 %1571, %v687
    %v1573 = vpop.permute.xlu0 %1572
    %v1575 = vmul.f32 %v1561, %v1555
    %v1576 = vmul.f32 %v1565, %v1556
    %v1577 = vmul.f32 %v1569, %v1557
    %v1578 = vmul.f32 %v1573, %v1558
    %v1579 = vadd.f32 %v1575, %v1576
    %v1580 = vadd.f32 %v1579, %v1577
    %v1581 = vadd.f32 %v1580, %v1578
    %v1582 = vrot.slane %v1581, 4
    %v1583 = vadd.f32 %v1581, %v1582
    %v1584 = vrot.slane %v1583, 2
    %v1585 = vadd.f32 %v1583, %v1584
    %v1586 = vrot.slane %v1585, 1
    %v1587 = vadd.f32 %v1585, %v1586
    %1588 = vst [vmem:[#allocation3 + $0x3] sm:$0x1] %v1587
    %1589 = vset.pattern.permute.xlu0 3
    %1590 = vperm.xlu0 %1589, %v1288
    %v1591 = vpop.permute.xlu0 %1590
    %1593 = vset.pattern.permute.xlu0 3
    %1594 = vperm.xlu0 %1593, %v1294
    %v1595 = vpop.permute.xlu0 %1594
    %1597 = vset.pattern.permute.xlu0 3
    %1598 = vperm.xlu0 %1597, %v1300
    %v1599 = vpop.permute.xlu0 %1598
    %1601 = vset.pattern.permute.xlu0 3
    %1602 = vperm.xlu0 %1601, %v1306
    %v1603 = vpop.permute.xlu0 %1602
    %v1605 = vlaneseq
    %v1606 = vshrl.u32 %v1605, 7
    %v1607 = vsub.s32 3, %v1606
    %v1608 = vrot.slane %v63, %v1607
    %v1609 = vmul.f32 %v1591, %v1608
    %v1610 = vmul.f32 %v1595, %v1608
    %v1611 = vmul.f32 %v1599, %v1608
    %v1612 = vmul.f32 %v1603, %v1608
    %v1613 = vadd.f32 %v1539, %v1609
    %v1614 = vadd.f32 %v1540, %v1610
    %v1615 = vadd.f32 %v1541, %v1611
    %v1616 = vadd.f32 %v1542, %v1612
    %v1617 = vmul.f32 %v1613, 0.5
    %v1618 = vmul.f32 %v1614, 0.5
    %v1619 = vmul.f32 %v1615, 0.5
    %v1620 = vmul.f32 %v1616, 0.5
    %v1621 = vtanh.pop %v1617
    %v1622 = vtanh.pop %v1618
    %v1623 = vtanh.pop %v1619
    %v1624 = vtanh.pop %v1620
    %v1625 = vadd.f32 %v1621, 1.0
    %v1626 = vadd.f32 %v1622, 1.0
    %v1627 = vadd.f32 %v1623, 1.0
    %v1628 = vadd.f32 %v1624, 1.0
    %v1629 = vmul.f32 %v1625, 0.5
    %v1630 = vmul.f32 %v1626, 0.5
    %v1631 = vmul.f32 %v1627, 0.5
    %v1632 = vmul.f32 %v1628, 0.5
    %1633 = vset.pattern.permute.xlu0 4
    %1634 = vperm.xlu0 %1633, %v669
    %v1635 = vpop.permute.xlu0 %1634
    %1637 = vset.pattern.permute.xlu0 4
    %1638 = vperm.xlu0 %1637, %v675
    %v1639 = vpop.permute.xlu0 %1638
    %1641 = vset.pattern.permute.xlu0 4
    %1642 = vperm.xlu0 %1641, %v681
    %v1643 = vpop.permute.xlu0 %1642
    %1645 = vset.pattern.permute.xlu0 4
    %1646 = vperm.xlu0 %1645, %v687
    %v1647 = vpop.permute.xlu0 %1646
    %v1649 = vmul.f32 %v1635, %v1629
    %v1650 = vmul.f32 %v1639, %v1630
    %v1651 = vmul.f32 %v1643, %v1631
    %v1652 = vmul.f32 %v1647, %v1632
    %v1653 = vadd.f32 %v1649, %v1650
    %v1654 = vadd.f32 %v1653, %v1651
    %v1655 = vadd.f32 %v1654, %v1652
    %v1656 = vrot.slane %v1655, 4
    %v1657 = vadd.f32 %v1655, %v1656
    %v1658 = vrot.slane %v1657, 2
    %v1659 = vadd.f32 %v1657, %v1658
    %v1660 = vrot.slane %v1659, 1
    %v1661 = vadd.f32 %v1659, %v1660
    %1662 = vst [vmem:[#allocation3 + $0x4] sm:$0x1] %v1661
    %1663 = vset.pattern.permute.xlu0 4
    %1664 = vperm.xlu0 %1663, %v1288
    %v1665 = vpop.permute.xlu0 %1664
    %1667 = vset.pattern.permute.xlu0 4
    %1668 = vperm.xlu0 %1667, %v1294
    %v1669 = vpop.permute.xlu0 %1668
    %1671 = vset.pattern.permute.xlu0 4
    %1672 = vperm.xlu0 %1671, %v1300
    %v1673 = vpop.permute.xlu0 %1672
    %1675 = vset.pattern.permute.xlu0 4
    %1676 = vperm.xlu0 %1675, %v1306
    %v1677 = vpop.permute.xlu0 %1676
    %v1679 = vlaneseq
    %v1680 = vshrl.u32 %v1679, 7
    %v1681 = vsub.s32 4, %v1680
    %v1682 = vrot.slane %v63, %v1681
    %v1683 = vmul.f32 %v1665, %v1682
    %v1684 = vmul.f32 %v1669, %v1682
    %v1685 = vmul.f32 %v1673, %v1682
    %v1686 = vmul.f32 %v1677, %v1682
    %v1687 = vadd.f32 %v1613, %v1683
    %v1688 = vadd.f32 %v1614, %v1684
    %v1689 = vadd.f32 %v1615, %v1685
    %v1690 = vadd.f32 %v1616, %v1686
    %v1691 = vmul.f32 %v1687, 0.5
    %v1692 = vmul.f32 %v1688, 0.5
    %v1693 = vmul.f32 %v1689, 0.5
    %v1694 = vmul.f32 %v1690, 0.5
    %v1695 = vtanh.pop %v1691
    %v1696 = vtanh.pop %v1692
    %v1697 = vtanh.pop %v1693
    %v1698 = vtanh.pop %v1694
    %v1699 = vadd.f32 %v1695, 1.0
    %v1700 = vadd.f32 %v1696, 1.0
    %v1701 = vadd.f32 %v1697, 1.0
    %v1702 = vadd.f32 %v1698, 1.0
    %v1703 = vmul.f32 %v1699, 0.5
    %v1704 = vmul.f32 %v1700, 0.5
    %v1705 = vmul.f32 %v1701, 0.5
    %v1706 = vmul.f32 %v1702, 0.5
    %1707 = vset.pattern.permute.xlu0 5
    %1708 = vperm.xlu0 %1707, %v669
    %v1709 = vpop.permute.xlu0 %1708
    %1711 = vset.pattern.permute.xlu0 5
    %1712 = vperm.xlu0 %1711, %v675
    %v1713 = vpop.permute.xlu0 %1712
    %1715 = vset.pattern.permute.xlu0 5
    %1716 = vperm.xlu0 %1715, %v681
    %v1717 = vpop.permute.xlu0 %1716
    %1719 = vset.pattern.permute.xlu0 5
    %1720 = vperm.xlu0 %1719, %v687
    %v1721 = vpop.permute.xlu0 %1720
    %v1723 = vmul.f32 %v1709, %v1703
    %v1724 = vmul.f32 %v1713, %v1704
    %v1725 = vmul.f32 %v1717, %v1705
    %v1726 = vmul.f32 %v1721, %v1706
    %v1727 = vadd.f32 %v1723, %v1724
    %v1728 = vadd.f32 %v1727, %v1725
    %v1729 = vadd.f32 %v1728, %v1726
    %v1730 = vrot.slane %v1729, 4
    %v1731 = vadd.f32 %v1729, %v1730
    %v1732 = vrot.slane %v1731, 2
    %v1733 = vadd.f32 %v1731, %v1732
    %v1734 = vrot.slane %v1733, 1
    %v1735 = vadd.f32 %v1733, %v1734
    %1736 = vst [vmem:[#allocation3 + $0x5] sm:$0x1] %v1735
    %1737 = vset.pattern.permute.xlu0 5
    %1738 = vperm.xlu0 %1737, %v1288
    %v1739 = vpop.permute.xlu0 %1738
    %1741 = vset.pattern.permute.xlu0 5
    %1742 = vperm.xlu0 %1741, %v1294
    %v1743 = vpop.permute.xlu0 %1742
    %1745 = vset.pattern.permute.xlu0 5
    %1746 = vperm.xlu0 %1745, %v1300
    %v1747 = vpop.permute.xlu0 %1746
    %1749 = vset.pattern.permute.xlu0 5
    %1750 = vperm.xlu0 %1749, %v1306
    %v1751 = vpop.permute.xlu0 %1750
    %v1753 = vlaneseq
    %v1754 = vshrl.u32 %v1753, 7
    %v1755 = vsub.s32 5, %v1754
    %v1756 = vrot.slane %v63, %v1755
    %v1757 = vmul.f32 %v1739, %v1756
    %v1758 = vmul.f32 %v1743, %v1756
    %v1759 = vmul.f32 %v1747, %v1756
    %v1760 = vmul.f32 %v1751, %v1756
    %v1761 = vadd.f32 %v1687, %v1757
    %v1762 = vadd.f32 %v1688, %v1758
    %v1763 = vadd.f32 %v1689, %v1759
    %v1764 = vadd.f32 %v1690, %v1760
    %v1765 = vmul.f32 %v1761, 0.5
    %v1766 = vmul.f32 %v1762, 0.5
    %v1767 = vmul.f32 %v1763, 0.5
    %v1768 = vmul.f32 %v1764, 0.5
    %v1769 = vtanh.pop %v1765
    %v1770 = vtanh.pop %v1766
    %v1771 = vtanh.pop %v1767
    %v1772 = vtanh.pop %v1768
    %v1773 = vadd.f32 %v1769, 1.0
    %v1774 = vadd.f32 %v1770, 1.0
    %v1775 = vadd.f32 %v1771, 1.0
    %v1776 = vadd.f32 %v1772, 1.0
    %v1777 = vmul.f32 %v1773, 0.5
    %v1778 = vmul.f32 %v1774, 0.5
    %v1779 = vmul.f32 %v1775, 0.5
    %v1780 = vmul.f32 %v1776, 0.5
    %1781 = vset.pattern.permute.xlu0 6
    %1782 = vperm.xlu0 %1781, %v669
    %v1783 = vpop.permute.xlu0 %1782
    %1785 = vset.pattern.permute.xlu0 6
    %1786 = vperm.xlu0 %1785, %v675
    %v1787 = vpop.permute.xlu0 %1786
    %1789 = vset.pattern.permute.xlu0 6
    %1790 = vperm.xlu0 %1789, %v681
    %v1791 = vpop.permute.xlu0 %1790
    %1793 = vset.pattern.permute.xlu0 6
    %1794 = vperm.xlu0 %1793, %v687
    %v1795 = vpop.permute.xlu0 %1794
    %v1797 = vmul.f32 %v1783, %v1777
    %v1798 = vmul.f32 %v1787, %v1778
    %v1799 = vmul.f32 %v1791, %v1779
    %v1800 = vmul.f32 %v1795, %v1780
    %v1801 = vadd.f32 %v1797, %v1798
    %v1802 = vadd.f32 %v1801, %v1799
    %v1803 = vadd.f32 %v1802, %v1800
    %v1804 = vrot.slane %v1803, 4
    %v1805 = vadd.f32 %v1803, %v1804
    %v1806 = vrot.slane %v1805, 2
    %v1807 = vadd.f32 %v1805, %v1806
    %v1808 = vrot.slane %v1807, 1
    %v1809 = vadd.f32 %v1807, %v1808
    %1810 = vst [vmem:[#allocation3 + $0x6] sm:$0x1] %v1809
    %1811 = vset.pattern.permute.xlu0 6
    %1812 = vperm.xlu0 %1811, %v1288
    %v1813 = vpop.permute.xlu0 %1812
    %1815 = vset.pattern.permute.xlu0 6
    %1816 = vperm.xlu0 %1815, %v1294
    %v1817 = vpop.permute.xlu0 %1816
    %1819 = vset.pattern.permute.xlu0 6
    %1820 = vperm.xlu0 %1819, %v1300
    %v1821 = vpop.permute.xlu0 %1820
    %1823 = vset.pattern.permute.xlu0 6
    %1824 = vperm.xlu0 %1823, %v1306
    %v1825 = vpop.permute.xlu0 %1824
    %v1827 = vlaneseq
    %v1828 = vshrl.u32 %v1827, 7
    %v1829 = vsub.s32 6, %v1828
    %v1830 = vrot.slane %v63, %v1829
    %v1831 = vmul.f32 %v1813, %v1830
    %v1832 = vmul.f32 %v1817, %v1830
    %v1833 = vmul.f32 %v1821, %v1830
    %v1834 = vmul.f32 %v1825, %v1830
    %v1835 = vadd.f32 %v1761, %v1831
    %v1836 = vadd.f32 %v1762, %v1832
    %v1837 = vadd.f32 %v1763, %v1833
    %v1838 = vadd.f32 %v1764, %v1834
    %v1839 = vmul.f32 %v1835, 0.5
    %v1840 = vmul.f32 %v1836, 0.5
    %v1841 = vmul.f32 %v1837, 0.5
    %v1842 = vmul.f32 %v1838, 0.5
    %v1843 = vtanh.pop %v1839
    %v1844 = vtanh.pop %v1840
    %v1845 = vtanh.pop %v1841
    %v1846 = vtanh.pop %v1842
    %v1847 = vadd.f32 %v1843, 1.0
    %v1848 = vadd.f32 %v1844, 1.0
    %v1849 = vadd.f32 %v1845, 1.0
    %v1850 = vadd.f32 %v1846, 1.0
    %v1851 = vmul.f32 %v1847, 0.5
    %v1852 = vmul.f32 %v1848, 0.5
    %v1853 = vmul.f32 %v1849, 0.5
    %v1854 = vmul.f32 %v1850, 0.5
    %1855 = vset.pattern.permute.xlu0 7
    %1856 = vperm.xlu0 %1855, %v669
    %v1857 = vpop.permute.xlu0 %1856
    %1859 = vset.pattern.permute.xlu0 7
    %1860 = vperm.xlu0 %1859, %v675
    %v1861 = vpop.permute.xlu0 %1860
    %1863 = vset.pattern.permute.xlu0 7
    %1864 = vperm.xlu0 %1863, %v681
    %v1865 = vpop.permute.xlu0 %1864
    %1867 = vset.pattern.permute.xlu0 7
    %1868 = vperm.xlu0 %1867, %v687
    %v1869 = vpop.permute.xlu0 %1868
    %v1871 = vmul.f32 %v1857, %v1851
    %v1872 = vmul.f32 %v1861, %v1852
    %v1873 = vmul.f32 %v1865, %v1853
    %v1874 = vmul.f32 %v1869, %v1854
    %v1875 = vadd.f32 %v1871, %v1872
    %v1876 = vadd.f32 %v1875, %v1873
    %v1877 = vadd.f32 %v1876, %v1874
    %v1878 = vrot.slane %v1877, 4
    %v1879 = vadd.f32 %v1877, %v1878
    %v1880 = vrot.slane %v1879, 2
    %v1881 = vadd.f32 %v1879, %v1880
    %v1882 = vrot.slane %v1881, 1
    %v1883 = vadd.f32 %v1881, %v1882
    %1884 = vst [vmem:[#allocation3 + $0x7] sm:$0x1] %v1883
    %1885 = vset.pattern.permute.xlu0 7
    %1886 = vperm.xlu0 %1885, %v1288
    %v1887 = vpop.permute.xlu0 %1886
    %1889 = vset.pattern.permute.xlu0 7
    %1890 = vperm.xlu0 %1889, %v1294
    %v1891 = vpop.permute.xlu0 %1890
    %1893 = vset.pattern.permute.xlu0 7
    %1894 = vperm.xlu0 %1893, %v1300
    %v1895 = vpop.permute.xlu0 %1894
    %1897 = vset.pattern.permute.xlu0 7
    %1898 = vperm.xlu0 %1897, %v1306
    %v1899 = vpop.permute.xlu0 %1898
    %v1901 = vlaneseq
    %v1902 = vshrl.u32 %v1901, 7
    %v1903 = vsub.s32 7, %v1902
    %v1904 = vrot.slane %v63, %v1903
    %v1905 = vmul.f32 %v1887, %v1904
    %v1906 = vmul.f32 %v1891, %v1904
    %v1907 = vmul.f32 %v1895, %v1904
    %v1908 = vmul.f32 %v1899, %v1904
    %v1909 = vadd.f32 %v1835, %v1905
    %v1910 = vadd.f32 %v1836, %v1906
    %v1911 = vadd.f32 %v1837, %v1907
    %v1912 = vadd.f32 %v1838, %v1908
    %1913 = vst [vmem:[#allocation2] sm:$0xff] %v1909
    %1914 = vst [vmem:[#allocation2 + $0x8] sm:$0xff] %v1910
    %1915 = vst [vmem:[#allocation2 + $0x10] sm:$0xff] %v1911
    %1916 = vst [vmem:[#allocation2 + $0x18] sm:$0xff] %v1912
    %v1917 = vld [vmem:[#allocation3] sm:$0xff]
    %1919 = vset.pattern.permute.xlu0 0
    %1920 = vperm.xlu0 %1919, %v65
    %v1921 = vpop.permute.xlu0 %1920
    %v1923 = vadd.f32 %v1917, %v1921
    %v1924 = vmul.f32 %v1923, 0.5
    %v1925 = vtanh.pop %v1924
    %v1926 = vadd.f32 %v1925, 1.0
    %v1927 = vmul.f32 %v1926, 0.5
    %s1928 = scalar_lea.vmem %s5, %s61
    %1929 = vst [vmem:[%s1928] sm:$0xff] %v1927
  $region26: #{_nade_forward.1} parent=0 // loop_footer
    %s60 = sadd.s32 1, %s56
  $region27: #{_nade_forward.1} parent=0 // loop_footer_branch
    %55 = sbr.rel target = $region23
  $region28: #{_nade_forward.1} parent=0 // loop_exit
    _
  // Predicated region
  $region29: #{_nade_forward.1} parent=0 // pred_check
    _
  $region30: #{_nade_forward.1} parent=0 // pred_check_branch
    %1931 = sbr.rel (0) target = $region32
  $region31: #{_nade_forward.1} parent=0 // pred_region
    _
  $region32: #{_nade_forward.1} parent=0 // pred_fallthru
    _
  // Predicated region
  $region33: #{_nade_forward.1} parent=0 // pred_check
    _
  $region34: #{_nade_forward.1} parent=0 // pred_check_branch
    %1933 = sbr.rel (0) target = $region36
  $region35: #{_nade_forward.1} parent=0 // pred_region
    _
  $region36: #{_nade_forward.1} parent=0 // pred_fallthru
    _

</llo_original>
